<compile_context>
chip_gen: v7x
topology: tpu7x:2x2x1
jax: 0.10.0
libtpu: 0.0.40
codegen_flags: <defaults>
</compile_context>

<pallas_src>
import functools

import jax
import jax.numpy as jnp
from jax.experimental import pallas as pl
from jax.experimental.pallas import tpu as pltpu


# Padded (lane-dense) widths used by the kernels.
K1P = 32     # conv1 contraction dim: 3*3*3 = 27 -> 32
C1P = 128    # conv1 output channels: 32 -> 128
C2P = 128    # conv2 output channels: 64 -> 128
NCP = 128    # classifier output lanes: num_classes -> 128


def _round_up(x, m):
    return ((x + m - 1) // m) * m


# --------------------------------------------------------------------------- #
# Kernel 1: conv1 as matmul (im2col patches @ folded weights) + bias + ReLU   #
# --------------------------------------------------------------------------- #
def _conv1_kernel(p_ref, w_ref, b_ref, o_ref):
    acc = jnp.dot(p_ref[...], w_ref[...], preferred_element_type=jnp.float32)
    acc = jnp.maximum(acc + b_ref[...], 0.0)        # f32 epilogue (v5e-safe)
    o_ref[...] = acc.astype(o_ref.dtype)            # bf16 activation out


def conv1_matmul(patches, w1k, b1k, *, tm):
    M, K = patches.shape
    C = w1k.shape[1]
    Mp = _round_up(M, tm)
    if Mp != M:
        patches = jnp.pad(patches, ((0, Mp - M), (0, 0)))
    out = pl.pallas_call(
        _conv1_kernel,
        out_shape=jax.ShapeDtypeStruct((Mp, C), jnp.bfloat16),
        grid=(Mp // tm,),
        in_specs=[
            pl.BlockSpec((tm, K), lambda i: (i, 0)),
            pl.BlockSpec((K, C), lambda i: (0, 0)),
            pl.BlockSpec((1, C), lambda i: (0, 0)),
        ],
        out_specs=pl.BlockSpec((tm, C), lambda i: (i, 0)),
        compiler_params=pltpu.CompilerParams(dimension_semantics=("parallel",)),
    )(patches, w1k, b1k)
    return out[:M]


# --------------------------------------------------------------------------- #
# Kernel 2: fused conv2 (stride-2, via im2col patches) + ReLU + global avg    #
#           pool + linear classifier + optional softmax.                      #
#           Grid = (N, spatial tiles); pool sum accumulates in VMEM scratch.  #
# --------------------------------------------------------------------------- #
def _conv2_head_kernel(p_ref, w2_ref, b2_ref, wc_ref, bc_ref, o_ref, acc_ref,
                       *, s2, softmax):
    j = pl.program_id(1)

    @pl.when(j == 0)
    def _():
        acc_ref[...] = jnp.zeros_like(acc_ref)

    y = jnp.dot(p_ref[0], w2_ref[...], preferred_element_type=jnp.float32)
    y = jnp.maximum(y + b2_ref[...], 0.0)            # [tm, C2P] f32
    tm = y.shape[0]
    if s2 % tm != 0:
        # Mask rows that belong to spatial padding so they don't pollute the pool.
        row = jax.lax.broadcasted_iota(jnp.int32, (tm, 1), 0) + j * tm
        y = jnp.where(row < s2, y, 0.0)
    acc_ref[...] += jnp.sum(y, axis=0, keepdims=True)

    @pl.when(j == pl.num_programs(1) - 1)
    def _():
        pooled = acc_ref[...] * (1.0 / s2)           # [1, C2P]
        logits = jnp.dot(pooled, wc_ref[...],
                         preferred_element_type=jnp.float32) + bc_ref[...]
        if softmax:                                  # softmax over class axis (dim=1)
            m = jnp.max(logits, axis=-1, keepdims=True)
            e = jnp.exp(logits - m)                  # padded classes: exp(-1e30) == 0
            denom = jnp.sum(e, axis=-1, keepdims=True)
            logits = e * pl.reciprocal(denom, approx=False)
        o_ref[...] = logits[None].astype(o_ref.dtype)


def conv2_head(patches, w2k, b2k, wck, bck, *, s2, tm, softmax):
    N, S2p, K2 = patches.shape
    out = pl.pallas_call(
        functools.partial(_conv2_head_kernel, s2=s2, softmax=softmax),
        out_shape=jax.ShapeDtypeStruct((N, 1, NCP), jnp.float32),
        grid=(N, S2p // tm),
        in_specs=[
            pl.BlockSpec((1, tm, K2), lambda n, j: (n, j, 0)),
            pl.BlockSpec((K2, C2P), lambda n, j: (0, 0)),
            pl.BlockSpec((1, C2P), lambda n, j: (0, 0)),
            pl.BlockSpec((C2P, NCP), lambda n, j: (0, 0)),
            pl.BlockSpec((1, NCP), lambda n, j: (0, 0)),
        ],
        out_specs=pl.BlockSpec((1, 1, NCP), lambda n, j: (n, 0, 0)),
        scratch_shapes=[pltpu.VMEM((1, C2P), jnp.float32)],
        compiler_params=pltpu.CompilerParams(
            dimension_semantics=("parallel", "arbitrary")),
    )(patches, w2k, b2k, wck, bck)
    return out.reshape(N, NCP)


# --------------------------------------------------------------------------- #
# Glue: im2col, parameter init, normalization folding + padding, forward      #
# --------------------------------------------------------------------------- #
def im2col(x_nhwc, k=3, stride=1, pad=1):
    N, H, W, C = x_nhwc.shape
    xp = jnp.pad(x_nhwc, ((0, 0), (pad, pad), (pad, pad), (0, 0)))
    Ho = (H + 2 * pad - k) // stride + 1
    Wo = (W + 2 * pad - k) // stride + 1
    cols = []
    for di in range(k):
        for dj in range(k):
            cols.append(xp[:, di:di + Ho * stride:stride,
                           dj:dj + Wo * stride:stride, :])
    patches = jnp.concatenate(cols, axis=-1)          # [N, Ho, Wo, k*k*C]
    return patches.reshape(N, Ho * Wo, k * k * C), Ho, Wo


def init_params(key, c_in=3, c1=32, c2=64, num_classes=8):
    k1, k2, k3 = jax.random.split(key, 3)
    # conv weights stored in im2col layout [(kh*kw*Cin), Cout]
    w1 = jax.random.normal(k1, (9 * c_in, c1), jnp.float32) / jnp.sqrt(9 * c_in)
    b1 = jnp.zeros((c1,), jnp.float32)
    w2 = jax.random.normal(k2, (9 * c1, c2), jnp.float32) / jnp.sqrt(9 * c1)
    b2 = jnp.zeros((c2,), jnp.float32)
    wc = jax.random.normal(k3, (c2, num_classes), jnp.float32) / jnp.sqrt(c2)
    bc = jnp.zeros((num_classes,), jnp.float32)
    mean = jnp.array([0.485, 0.456, 0.406], jnp.float32)   # conf['encoder']['mean']
    std = jnp.array([0.229, 0.224, 0.225], jnp.float32)    # conf['encoder']['std']
    return dict(w1=w1, b1=b1, w2=w2, b2=b2, wc=wc, bc=bc, mean=mean, std=std)


def fold_and_pad_params(raw):
    """Fold (x - mean)/std into conv1, pad to lane-dense kernel shapes, cast bf16."""
    c_in = raw["mean"].shape[0]
    c1 = raw["w1"].shape[1]
    c2 = raw["w2"].shape[1]
    nc = raw["wc"].shape[1]
    # conv((x - mean)/std) == conv_scaled(x) + const  =>  scale rows, shift bias.
    scale_k = jnp.tile(1.0 / raw["std"], 9)               # (27,), K order = (kh,kw,c)
    shift_k = jnp.tile(raw["mean"] / raw["std"], 9)
    w1f = raw["w1"] * scale_k[:, None]                    # (27, c1)
    b1f = raw["b1"] - shift_k @ raw["w1"]                 # (c1,)

    w1k = jnp.zeros((K1P, C1P), jnp.float32).at[:9 * c_in, :c1].set(w1f)
    b1k = jnp.zeros((1, C1P), jnp.float32).at[0, :c1].set(b1f)

    # conv2: embed (9*c1, c2) rows into the channel-padded (9*C1P, C2P) layout.
    w2r = raw["w2"].reshape(9, c1, c2)
    w2k = (jnp.zeros((9, C1P, C2P), jnp.float32)
           .at[:, :c1, :c2].set(w2r)
           .reshape(9 * C1P, C2P))
    b2k = jnp.zeros((1, C2P), jnp.float32).at[0, :c2].set(raw["b2"])

    wck = jnp.zeros((C2P, NCP), jnp.float32).at[:c2, :nc].set(raw["wc"])
    # padded class lanes get -1e30 so softmax gives them exactly zero mass
    bck = jnp.full((1, NCP), -1e30, jnp.float32).at[0, :nc].set(raw["bc"])

    return dict(w1k=w1k.astype(jnp.bfloat16), b1k=b1k,
                w2k=w2k.astype(jnp.bfloat16), b2k=b2k,
                wck=wck, bck=bck)


@functools.partial(jax.jit, static_argnames=("num_classes", "softmax"))
def class_network_forward(imgs_nchw, kp, *, num_classes, softmax=True):
    N, C, H, W = imgs_nchw.shape
    # Normalization is folded into conv1 (w1k/b1k): feed raw pixels directly.
    x = jnp.transpose(imgs_nchw, (0, 2, 3, 1)).astype(jnp.bfloat16)   # NHWC bf16

    # conv1: 3x3, stride 1, pad 1
    p1, ho1, wo1 = im2col(x, k=3, stride=1, pad=1)          # [N, H*W, 27] bf16
    m1 = N * ho1 * wo1
    p1 = p1.reshape(m1, 9 * C)
    p1 = jnp.pad(p1, ((0, 0), (0, K1P - 9 * C)))            # K 27 -> 32
    tm1 = min(512, _round_up(m1, 8))
    y1 = conv1_matmul(p1, kp["w1k"], kp["b1k"], tm=tm1)     # [m1, 128] bf16
    x1 = y1.reshape(N, ho1, wo1, C1P)

    # conv2 (3x3, stride 2, pad 1) + ReLU + global avg pool + FC + softmax (fused)
    p2, ho2, wo2 = im2col(x1, k=3, stride=2, pad=1)         # [N, S2, 9*128] bf16
    s2 = ho2 * wo2
    tm2 = min(512, _round_up(s2, 8))
    s2p = _round_up(s2, tm2)
    if s2p != s2:
        p2 = jnp.pad(p2, ((0, 0), (0, s2p - s2), (0, 0)))
    out = conv2_head(p2, kp["w2k"], kp["b2k"], kp["wck"], kp["bck"],
                     s2=s2, tm=tm2, softmax=softmax)        # [N, 128]
    return out[:, :num_classes]


# Pure-JAX f32 reference (unfolded, unpadded params) for correctness checking.
def reference_forward(imgs, raw, *, softmax=True):
    mean = raw["mean"].reshape(1, 3, 1, 1)
    std = raw["std"].reshape(1, 3, 1, 1)
    x = (imgs - mean) / std
    x = jnp.transpose(x, (0, 2, 3, 1))
    c_in = raw["mean"].shape[0]
    c1 = raw["w1"].shape[1]
    c2 = raw["w2"].shape[1]
    w1 = raw["w1"].reshape(3, 3, c_in, c1)
    w2 = raw["w2"].reshape(3, 3, c1, c2)
    dn = ("NHWC", "HWIO", "NHWC")
    y = jax.lax.conv_general_dilated(x, w1, (1, 1), ((1, 1), (1, 1)),
                                     dimension_numbers=dn) + raw["b1"]
    y = jnp.maximum(y, 0.0)
    y = jax.lax.conv_general_dilated(y, w2, (2, 2), ((1, 1), (1, 1)),
                                     dimension_numbers=dn) + raw["b2"]
    y = jnp.maximum(y, 0.0)
    pooled = jnp.mean(y, axis=(1, 2))
    logits = pooled @ raw["wc"] + raw["bc"]
    if softmax:
        logits = jax.nn.softmax(logits, axis=1)
    return logits


if __name__ == "__main__":
    key = jax.random.PRNGKey(0)
    k_img, k_par = jax.random.split(key)
    imgs = jax.random.uniform(k_img, (2, 3, 16, 16), jnp.float32)   # NCHW like PyTorch
    raw = init_params(k_par, c_in=3, c1=32, c2=64, num_classes=8)
    kp = fold_and_pad_params(raw)

    pred = class_network_forward(imgs, kp, num_classes=8, softmax=True)
    pred = jax.block_until_ready(pred)

    assert pred.shape == (2, 8)
    row_sums = jnp.sum(pred, axis=1)
    assert bool(jnp.all(jnp.abs(row_sums - 1.0) < 1e-3)), "softmax rows must sum to 1"
    ref = reference_forward(imgs, raw, softmax=True)
    assert bool(jnp.all(jnp.abs(pred - ref) < 5e-2)), "mismatch vs f32 reference"
    print("KERNEL_OK")
</pallas_src>

<mosaic_0001>
module attributes {stable_mosaic.version = 11 : i64} {
  func.func @_conv1_kernel(%arg0: i32, %arg1: memref<512x32xbf16, #tpu.memory_space<vmem>>, %arg2: memref<32x128xbf16, #tpu.memory_space<vmem>>, %arg3: memref<1x128xf32, #tpu.memory_space<vmem>>, %arg4: memref<512x128xbf16, #tpu.memory_space<vmem>>) attributes {dimension_semantics = [#tpu.dimension_semantics<parallel>], iteration_bounds = array<i64: 1>, scalar_prefetch = 0 : i64, scratch_operands = 0 : i64, tpu.core_type = #tpu.core_type<tc>, window_params = [{transform_indices = @transform_0, window_bounds = array<i64: 512, 32>}, {pipeline_mode = #tpu.pipeline_mode<synchronous>, transform_indices = @transform_1, window_bounds = array<i64: 32, 128>}, {pipeline_mode = #tpu.pipeline_mode<synchronous>, transform_indices = @transform_2, window_bounds = array<i64: 1, 128>}, {transform_indices = @transform_3, window_bounds = array<i64: 512, 128>}]} {
    %c0 = arith.constant 0 : index
    %c0_0 = arith.constant 0 : index
    %0 = vector.load %arg1[%c0, %c0_0] : memref<512x32xbf16, #tpu.memory_space<vmem>>, vector<512x32xbf16>
    %c0_1 = arith.constant 0 : index
    %c0_2 = arith.constant 0 : index
    %1 = vector.load %arg2[%c0_1, %c0_2] : memref<32x128xbf16, #tpu.memory_space<vmem>>, vector<32x128xbf16>
    %cst = arith.constant dense<0.000000e+00> : vector<512x128xf32>
    %2 = tpu.matmul %0, %1, %cst {dimension_numbers = #tpu.dot_dimension_numbers<[1], [0], [0], [1], [0, 0, 1, 1], [], []>} : vector<512x32xbf16>, vector<32x128xbf16>, vector<512x128xf32> -> vector<512x128xf32>
    %c0_3 = arith.constant 0 : index
    %c0_4 = arith.constant 0 : index
    %3 = vector.load %arg3[%c0_3, %c0_4] : memref<1x128xf32, #tpu.memory_space<vmem>>, vector<1x128xf32>
    %4 = vector.broadcast %3 : vector<1x128xf32> to vector<512x128xf32>
    %5 = arith.addf %2, %4 : vector<512x128xf32>
    %cst_5 = arith.constant 0.000000e+00 : f32
    %6 = vector.broadcast %cst_5 : f32 to vector<512x128xf32>
    %7 = arith.maximumf %5, %6 : vector<512x128xf32>
    %8 = arith.truncf %7 : vector<512x128xf32> to vector<512x128xbf16>
    %c0_6 = arith.constant 0 : index
    %c0_7 = arith.constant 0 : index
    %9 = vector.load %arg4[%c0_6, %c0_7] : memref<512x128xbf16, #tpu.memory_space<vmem>>, vector<512x128xbf16>
    tpu.vector_store %arg4[%c0_6, %c0_7], %8 {strides = array<i32>} : memref<512x128xbf16, #tpu.memory_space<vmem>>, vector<512x128xbf16>,
    return
  }
  func.func @transform_0(%arg0: i32) -> (i32, i32) {
    %c0_i32 = arith.constant 0 : i32
    %c0_i32_0 = arith.constant 0 : i32
    return %arg0, %c0_i32 : i32, i32
  }
  func.func @transform_1(%arg0: i32) -> (i32, i32) {
    %c0_i32 = arith.constant 0 : i32
    %c0_i32_0 = arith.constant 0 : i32
    %c0_i32_1 = arith.constant 0 : i32
    return %c0_i32, %c0_i32_0 : i32, i32
  }
  func.func @transform_2(%arg0: i32) -> (i32, i32) {
    %c0_i32 = arith.constant 0 : i32
    %c0_i32_0 = arith.constant 0 : i32
    %c0_i32_1 = arith.constant 0 : i32
    return %c0_i32, %c0_i32_0 : i32, i32
  }
  func.func @transform_3(%arg0: i32) -> (i32, i32) {
    %c0_i32 = arith.constant 0 : i32
    %c0_i32_0 = arith.constant 0 : i32
    return %arg0, %c0_i32 : i32, i32
  }
}

module attributes {stable_mosaic.version = 11 : i64} {
  func.func @_conv2_head_kernel(%arg0: i32, %arg1: i32, %arg2: memref<1x64x1152xbf16, #tpu.memory_space<vmem>>, %arg3: memref<1152x128xbf16, #tpu.memory_space<vmem>>, %arg4: memref<1x128xf32, #tpu.memory_space<vmem>>, %arg5: memref<128x128xf32, #tpu.memory_space<vmem>>, %arg6: memref<1x128xf32, #tpu.memory_space<vmem>>, %arg7: memref<1x1x128xf32, #tpu.memory_space<vmem>>, %arg8: memref<1x128xf32, #tpu.memory_space<vmem>>) attributes {dimension_semantics = [#tpu.dimension_semantics<parallel>, #tpu.dimension_semantics<arbitrary>], iteration_bounds = array<i64: 2, 1>, scalar_prefetch = 0 : i64, scratch_operands = 1 : i64, tpu.core_type = #tpu.core_type<tc>, window_params = [{transform_indices = @transform_0, window_bounds = array<i64: 1, 64, 1152>}, {pipeline_mode = #tpu.pipeline_mode<synchronous>, transform_indices = @transform_1, window_bounds = array<i64: 1152, 128>}, {pipeline_mode = #tpu.pipeline_mode<synchronous>, transform_indices = @transform_2, window_bounds = array<i64: 1, 128>}, {pipeline_mode = #tpu.pipeline_mode<synchronous>, transform_indices = @transform_3, window_bounds = array<i64: 128, 128>}, {pipeline_mode = #tpu.pipeline_mode<synchronous>, transform_indices = @transform_4, window_bounds = array<i64: 1, 128>}, {transform_indices = @transform_5, window_bounds = array<i64: 1, 1, 128>}]} {
    %c0_i32 = arith.constant 0 : i32
    %0 = arith.cmpi eq, %arg1, %c0_i32 : i32
    %1 = arith.extui %0 : i1 to i32
    %c0_i32_0 = arith.constant 0 : i32
    %2 = arith.cmpi ne, %1, %c0_i32_0 : i32
    scf.if %2 {
      %cst_15 = arith.constant 0.000000e+00 : f32
      %20 = vector.broadcast %cst_15 : f32 to vector<1x128xf32>
      %c0_16 = arith.constant 0 : index
      %c0_17 = arith.constant 0 : index
      %21 = vector.load %arg8[%c0_16, %c0_17] : memref<1x128xf32, #tpu.memory_space<vmem>>, vector<1x128xf32>
      tpu.vector_store %arg8[%c0_16, %c0_17], %20 {strides = array<i32>} : memref<1x128xf32, #tpu.memory_space<vmem>>, vector<1x128xf32>,
    } else {
    }
    %c0 = arith.constant 0 : index
    %c0_1 = arith.constant 0 : index
    %c0_2 = arith.constant 0 : index
    %3 = vector.load %arg2[%c0, %c0_1, %c0_2] : memref<1x64x1152xbf16, #tpu.memory_space<vmem>>, vector<1x64x1152xbf16>
    %4 = vector.shape_cast %3 : vector<1x64x1152xbf16> to vector<64x1152xbf16>
    %c0_3 = arith.constant 0 : index
    %c0_4 = arith.constant 0 : index
    %5 = vector.load %arg3[%c0_3, %c0_4] : memref<1152x128xbf16, #tpu.memory_space<vmem>>, vector<1152x128xbf16>
    %cst = arith.constant dense<0.000000e+00> : vector<64x128xf32>
    %6 = tpu.matmul %4, %5, %cst {dimension_numbers = #tpu.dot_dimension_numbers<[1], [0], [0], [1], [0, 0, 1, 1], [], []>} : vector<64x1152xbf16>, vector<1152x128xbf16>, vector<64x128xf32> -> vector<64x128xf32>
    %c0_5 = arith.constant 0 : index
    %c0_6 = arith.constant 0 : index
    %7 = vector.load %arg4[%c0_5, %c0_6] : memref<1x128xf32, #tpu.memory_space<vmem>>, vector<1x128xf32>
    %8 = vector.broadcast %7 : vector<1x128xf32> to vector<64x128xf32>
    %9 = arith.addf %6, %8 : vector<64x128xf32>
    %cst_7 = arith.constant 0.000000e+00 : f32
    %10 = vector.broadcast %cst_7 : f32 to vector<64x128xf32>
    %11 = arith.maximumf %9, %10 : vector<64x128xf32>
    %c0_8 = arith.constant 0 : index
    %c0_9 = arith.constant 0 : index
    %12 = vector.load %arg8[%c0_8, %c0_9] : memref<1x128xf32, #tpu.memory_space<vmem>>, vector<1x128xf32>
    %cst_10 = arith.constant dense<0.000000e+00> : vector<128xf32>
    %13 = vector.multi_reduction <add>, %11, %cst_10 [0] : vector<64x128xf32> to vector<128xf32>
    %14 = vector.shape_cast %13 : vector<128xf32> to vector<1x128xf32>
    %15 = arith.addf %12, %14 : vector<1x128xf32>
    %c0_11 = arith.constant 0 : index
    %c0_12 = arith.constant 0 : index
    %16 = vector.load %arg8[%c0_11, %c0_12] : memref<1x128xf32, #tpu.memory_space<vmem>>, vector<1x128xf32>
    tpu.vector_store %arg8[%c0_11, %c0_12], %15 {strides = array<i32>} : memref<1x128xf32, #tpu.memory_space<vmem>>, vector<1x128xf32>,
    %c0_i32_13 = arith.constant 0 : i32
    %17 = arith.cmpi eq, %arg1, %c0_i32_13 : i32
    %18 = arith.extui %17 : i1 to i32
    %c0_i32_14 = arith.constant 0 : i32
    %19 = arith.cmpi ne, %18, %c0_i32_14 : i32
    scf.if %19 {
      %c0_15 = arith.constant 0 : index
      %c0_16 = arith.constant 0 : index
      %20 = vector.load %arg8[%c0_15, %c0_16] : memref<1x128xf32, #tpu.memory_space<vmem>>, vector<1x128xf32>
      %cst_17 = arith.constant 1.562500e-02 : f32
      %21 = vector.broadcast %cst_17 : f32 to vector<1x128xf32>
      %22 = arith.mulf %20, %21 : vector<1x128xf32>
      %c0_18 = arith.constant 0 : index
      %c0_19 = arith.constant 0 : index
      %23 = vector.load %arg5[%c0_18, %c0_19] : memref<128x128xf32, #tpu.memory_space<vmem>>, vector<128x128xf32>
      %cst_20 = arith.constant dense<0.000000e+00> : vector<1x128xf32>
      %24 = tpu.matmul %22, %23, %cst_20 {dimension_numbers = #tpu.dot_dimension_numbers<[1], [0], [0], [1], [0, 0, 1, 1], [], []>} : vector<1x128xf32>, vector<128x128xf32>, vector<1x128xf32> -> vector<1x128xf32>
      %c0_21 = arith.constant 0 : index
      %c0_22 = arith.constant 0 : index
      %25 = vector.load %arg6[%c0_21, %c0_22] : memref<1x128xf32, #tpu.memory_space<vmem>>, vector<1x128xf32>
      %26 = arith.addf %24, %25 : vector<1x128xf32>
      %cst_23 = arith.constant dense<0xFF800000> : vector<1xf32>
      %27 = vector.multi_reduction <maximumf>, %26, %cst_23 [1] : vector<1x128xf32> to vector<1xf32>
      %28 = vector.shape_cast %27 : vector<1xf32> to vector<1x1xf32>
      %29 = vector.broadcast %28 : vector<1x1xf32> to vector<1x128xf32>
      %30 = arith.subf %26, %29 : vector<1x128xf32>
      %31 = math.exp %30 : vector<1x128xf32>
      %cst_24 = arith.constant dense<0.000000e+00> : vector<1xf32>
      %32 = vector.multi_reduction <add>, %31, %cst_24 [1] : vector<1x128xf32> to vector<1xf32>
      %33 = vector.shape_cast %32 : vector<1xf32> to vector<1x1xf32>
      %34 = tpu.reciprocal %33 : vector<1x1xf32> -> vector<1x1xf32>
      %35 = vector.broadcast %34 : vector<1x1xf32> to vector<1x128xf32>
      %36 = arith.mulf %31, %35 : vector<1x128xf32>
      %37 = vector.shape_cast %36 : vector<1x128xf32> to vector<1x1x128xf32>
      %c0_25 = arith.constant 0 : index
      %c0_26 = arith.constant 0 : index
      %c0_27 = arith.constant 0 : index
      %38 = vector.load %arg7[%c0_25, %c0_26, %c0_27] : memref<1x1x128xf32, #tpu.memory_space<vmem>>, vector<1x1x128xf32>
      tpu.vector_store %arg7[%c0_25, %c0_26, %c0_27], %37 {strides = array<i32>} : memref<1x1x128xf32, #tpu.memory_space<vmem>>, vector<1x1x128xf32>,
    } else {
    }
    return
  }
  func.func @transform_0(%arg0: i32, %arg1: i32) -> (i32, i32, i32) {
    %c0_i32 = arith.constant 0 : i32
    %c0_i32_0 = arith.constant 0 : i32
    return %arg0, %arg1, %c0_i32 : i32, i32, i32
  }
  func.func @transform_1(%arg0: i32, %arg1: i32) -> (i32, i32) {
    %c0_i32 = arith.constant 0 : i32
    %c0_i32_0 = arith.constant 0 : i32
    %c0_i32_1 = arith.constant 0 : i32
    return %c0_i32, %c0_i32_0 : i32, i32
  }
  func.func @transform_2(%arg0: i32, %arg1: i32) -> (i32, i32) {
    %c0_i32 = arith.constant 0 : i32
    %c0_i32_0 = arith.constant 0 : i32
    %c0_i32_1 = arith.constant 0 : i32
    return %c0_i32, %c0_i32_0 : i32, i32
  }
  func.func @transform_3(%arg0: i32, %arg1: i32) -> (i32, i32) {
    %c0_i32 = arith.constant 0 : i32
    %c0_i32_0 = arith.constant 0 : i32
    %c0_i32_1 = arith.constant 0 : i32
    return %c0_i32, %c0_i32_0 : i32, i32
  }
  func.func @transform_4(%arg0: i32, %arg1: i32) -> (i32, i32) {
    %c0_i32 = arith.constant 0 : i32
    %c0_i32_0 = arith.constant 0 : i32
    %c0_i32_1 = arith.constant 0 : i32
    return %c0_i32, %c0_i32_0 : i32, i32
  }
  func.func @transform_5(%arg0: i32, %arg1: i32) -> (i32, i32, i32) {
    %c0_i32 = arith.constant 0 : i32
    %c0_i32_0 = arith.constant 0 : i32
    %c0_i32_1 = arith.constant 0 : i32
    return %arg0, %c0_i32, %c0_i32_0 : i32, i32, i32
  }
}

</mosaic_0001>

<llo_original>
// kernel: class_network_forward.2
$region0: #{class_network_forward.2}
  #allocation0 [shape = 'u32[]', space=smem, size = 0x4, offset = 0x4, fixed_abs, tag = 'smem constant byte address 0x4 - core index']
  #allocation1 [shape = 'u32[144,128]{1,0:T(1,128)}', space=vmem, size = 0x12000, scoped, tag = 'internal scratch']
  %s0 = inlined_call_operand.vmem [shape: bf16[512,32], index: 0, kind: input, shape index: {}]
  %s1 = inlined_call_operand.vmem [shape: bf16[32,128], index: 1, kind: input, shape index: {}]
  %s2 = inlined_call_operand.vmem [shape: f32[1,128], index: 2, kind: input, shape index: {}]
  %s3 = inlined_call_operand.vmem [shape: bf16[512,128], index: 3, kind: output, shape index: {}]
  %s4 = sld [smem:[#allocation0]]
  $region22: #{class_network_forward.2} parent=0
    _
  %s6 = ssub.s32 1, %s4
  %s7 = scalar_select 0, %s6, %s4
  // Predicated region
  $region2: #{class_network_forward.2} parent=0 // pred_check
    _
  $region3: #{class_network_forward.2} parent=0 // pred_check_branch
    %9 = sbr.rel (0) target = $region5
  $region4: #{class_network_forward.2} parent=0 // pred_region
    _
  $region5: #{class_network_forward.2} parent=0 // pred_fallthru
    _
  // Predicated region
  $region6: #{class_network_forward.2} parent=0 // pred_check
    _
  $region7: #{class_network_forward.2} parent=0 // pred_check_branch
    %11 = sbr.rel (0) target = $region9
  $region8: #{class_network_forward.2} parent=0 // pred_region
    _
  $region9: #{class_network_forward.2} parent=0 // pred_fallthru
    _
  // Predicated region
  $region10: #{class_network_forward.2} parent=0 // pred_check
    _
  $region11: #{class_network_forward.2} parent=0 // pred_check_branch
    %13 = sbr.rel (0) target = $region13
  $region12: #{class_network_forward.2} parent=0 // pred_region
    _
  $region13: #{class_network_forward.2} parent=0 // pred_fallthru
    _
  %v15 = vld [vmem:[%s0] sm:$0xf]
  %v16 = vld [vmem:[%s0 + $0x4] sm:$0xf]
  %v17 = vld [vmem:[%s0 + $0x8] sm:$0xf]
  %v18 = vld [vmem:[%s0 + $0xc] sm:$0xf]
  %v19 = vld [vmem:[%s0 + $0x10] sm:$0xf]
  %v20 = vld [vmem:[%s0 + $0x14] sm:$0xf]
  %v21 = vld [vmem:[%s0 + $0x18] sm:$0xf]
  %v22 = vld [vmem:[%s0 + $0x1c] sm:$0xf]
  %v23 = vld [vmem:[%s0 + $0x20] sm:$0xf]
  %v24 = vld [vmem:[%s0 + $0x24] sm:$0xf]
  %v25 = vld [vmem:[%s0 + $0x28] sm:$0xf]
  %v26 = vld [vmem:[%s0 + $0x2c] sm:$0xf]
  %v27 = vld [vmem:[%s0 + $0x30] sm:$0xf]
  %v28 = vld [vmem:[%s0 + $0x34] sm:$0xf]
  %v29 = vld [vmem:[%s0 + $0x38] sm:$0xf]
  %v30 = vld [vmem:[%s0 + $0x3c] sm:$0xf]
  %v31 = vld [vmem:[%s0 + $0x40] sm:$0xf]
  %v32 = vld [vmem:[%s0 + $0x44] sm:$0xf]
  %v33 = vld [vmem:[%s0 + $0x48] sm:$0xf]
  %v34 = vld [vmem:[%s0 + $0x4c] sm:$0xf]
  %v35 = vld [vmem:[%s0 + $0x50] sm:$0xf]
  %v36 = vld [vmem:[%s0 + $0x54] sm:$0xf]
  %v37 = vld [vmem:[%s0 + $0x58] sm:$0xf]
  %v38 = vld [vmem:[%s0 + $0x5c] sm:$0xf]
  %v39 = vld [vmem:[%s0 + $0x60] sm:$0xf]
  %v40 = vld [vmem:[%s0 + $0x64] sm:$0xf]
  %v41 = vld [vmem:[%s0 + $0x68] sm:$0xf]
  %v42 = vld [vmem:[%s0 + $0x6c] sm:$0xf]
  %v43 = vld [vmem:[%s0 + $0x70] sm:$0xf]
  %v44 = vld [vmem:[%s0 + $0x74] sm:$0xf]
  %v45 = vld [vmem:[%s0 + $0x78] sm:$0xf]
  %v46 = vld [vmem:[%s0 + $0x7c] sm:$0xf]
  %v47 = vld [vmem:[%s0 + $0x80] sm:$0xf]
  %v48 = vld [vmem:[%s0 + $0x84] sm:$0xf]
  %v49 = vld [vmem:[%s0 + $0x88] sm:$0xf]
  %v50 = vld [vmem:[%s0 + $0x8c] sm:$0xf]
  %v51 = vld [vmem:[%s0 + $0x90] sm:$0xf]
  %v52 = vld [vmem:[%s0 + $0x94] sm:$0xf]
  %v53 = vld [vmem:[%s0 + $0x98] sm:$0xf]
  %v54 = vld [vmem:[%s0 + $0x9c] sm:$0xf]
  %v55 = vld [vmem:[%s0 + $0xa0] sm:$0xf]
  %v56 = vld [vmem:[%s0 + $0xa4] sm:$0xf]
  %v57 = vld [vmem:[%s0 + $0xa8] sm:$0xf]
  %v58 = vld [vmem:[%s0 + $0xac] sm:$0xf]
  %v59 = vld [vmem:[%s0 + $0xb0] sm:$0xf]
  %v60 = vld [vmem:[%s0 + $0xb4] sm:$0xf]
  %v61 = vld [vmem:[%s0 + $0xb8] sm:$0xf]
  %v62 = vld [vmem:[%s0 + $0xbc] sm:$0xf]
  %v63 = vld [vmem:[%s0 + $0xc0] sm:$0xf]
  %v64 = vld [vmem:[%s0 + $0xc4] sm:$0xf]
  %v65 = vld [vmem:[%s0 + $0xc8] sm:$0xf]
  %v66 = vld [vmem:[%s0 + $0xcc] sm:$0xf]
  %v67 = vld [vmem:[%s0 + $0xd0] sm:$0xf]
  %v68 = vld [vmem:[%s0 + $0xd4] sm:$0xf]
  %v69 = vld [vmem:[%s0 + $0xd8] sm:$0xf]
  %v70 = vld [vmem:[%s0 + $0xdc] sm:$0xf]
  %v71 = vld [vmem:[%s0 + $0xe0] sm:$0xf]
  %v72 = vld [vmem:[%s0 + $0xe4] sm:$0xf]
  %v73 = vld [vmem:[%s0 + $0xe8] sm:$0xf]
  %v74 = vld [vmem:[%s0 + $0xec] sm:$0xf]
  %v75 = vld [vmem:[%s0 + $0xf0] sm:$0xf]
  %v76 = vld [vmem:[%s0 + $0xf4] sm:$0xf]
  %v77 = vld [vmem:[%s0 + $0xf8] sm:$0xf]
  %v78 = vld [vmem:[%s0 + $0xfc] sm:$0xf]
  %v79 = vld [vmem:[%s1] sm:$0xf]
  %v80 = vld [vmem:[%s1 + $0x4] sm:$0xf]
  %v81 = vld [vmem:[%s1 + $0x8] sm:$0xf]
  %v82 = vld [vmem:[%s1 + $0xc] sm:$0xf]
  %v83 = vld [vmem:[%s2] sm:$0x1]
  %v85 = vlaneseq
  %v86 = vshrl.u32 %v85, 7
  %v87 = vsub.s32 0, %v86
  %v88 = vrot.slane %v83, %v87
  %v154 = vunpack.c.l.b16 %v15
  %v155 = vunpack.c.l.b16 %v16
  %v156 = vunpack.c.l.b16 %v17
  %v157 = vunpack.c.l.b16 %v18
  %v158 = vunpack.c.l.b16 %v19
  %v159 = vunpack.c.l.b16 %v20
  %v160 = vunpack.c.l.b16 %v21
  %v161 = vunpack.c.l.b16 %v22
  %v162 = vunpack.c.l.b16 %v23
  %v163 = vunpack.c.l.b16 %v24
  %v164 = vunpack.c.l.b16 %v25
  %v165 = vunpack.c.l.b16 %v26
  %v166 = vunpack.c.l.b16 %v27
  %v167 = vunpack.c.l.b16 %v28
  %v168 = vunpack.c.l.b16 %v29
  %v169 = vunpack.c.l.b16 %v30
  %v170 = vunpack.c.l.b16 %v31
  %v171 = vunpack.c.l.b16 %v32
  %v172 = vunpack.c.l.b16 %v33
  %v173 = vunpack.c.l.b16 %v34
  %v174 = vunpack.c.l.b16 %v35
  %v175 = vunpack.c.l.b16 %v36
  %v176 = vunpack.c.l.b16 %v37
  %v177 = vunpack.c.l.b16 %v38
  %v178 = vunpack.c.l.b16 %v39
  %v179 = vunpack.c.l.b16 %v40
  %v180 = vunpack.c.l.b16 %v41
  %v181 = vunpack.c.l.b16 %v42
  %v182 = vunpack.c.l.b16 %v43
  %v183 = vunpack.c.l.b16 %v44
  %v184 = vunpack.c.l.b16 %v45
  %v185 = vunpack.c.l.b16 %v46
  %v186 = vunpack.c.l.b16 %v47
  %v187 = vunpack.c.l.b16 %v48
  %v188 = vunpack.c.l.b16 %v49
  %v189 = vunpack.c.l.b16 %v50
  %v190 = vunpack.c.l.b16 %v51
  %v191 = vunpack.c.l.b16 %v52
  %v192 = vunpack.c.l.b16 %v53
  %v193 = vunpack.c.l.b16 %v54
  %v194 = vunpack.c.l.b16 %v55
  %v195 = vunpack.c.l.b16 %v56
  %v196 = vunpack.c.l.b16 %v57
  %v197 = vunpack.c.l.b16 %v58
  %v198 = vunpack.c.l.b16 %v59
  %v199 = vunpack.c.l.b16 %v60
  %v200 = vunpack.c.l.b16 %v61
  %v201 = vunpack.c.l.b16 %v62
  %v202 = vunpack.c.l.b16 %v63
  %v203 = vunpack.c.l.b16 %v64
  %v204 = vunpack.c.l.b16 %v65
  %v205 = vunpack.c.l.b16 %v66
  %v206 = vunpack.c.l.b16 %v67
  %v207 = vunpack.c.l.b16 %v68
  %v208 = vunpack.c.l.b16 %v69
  %v209 = vunpack.c.l.b16 %v70
  %v210 = vunpack.c.l.b16 %v71
  %v211 = vunpack.c.l.b16 %v72
  %v212 = vunpack.c.l.b16 %v73
  %v213 = vunpack.c.l.b16 %v74
  %v214 = vunpack.c.l.b16 %v75
  %v215 = vunpack.c.l.b16 %v76
  %v216 = vunpack.c.l.b16 %v77
  %v217 = vunpack.c.l.b16 %v78
  %v218 = vpack.c.b16 %v155, %v154
  %v219 = vpack.c.b16 %v157, %v156
  %v220 = vpack.c.b16 %v159, %v158
  %v221 = vpack.c.b16 %v161, %v160
  %v222 = vpack.c.b16 %v163, %v162
  %v223 = vpack.c.b16 %v165, %v164
  %v224 = vpack.c.b16 %v167, %v166
  %v225 = vpack.c.b16 %v169, %v168
  %v226 = vpack.c.b16 %v171, %v170
  %v227 = vpack.c.b16 %v173, %v172
  %v228 = vpack.c.b16 %v175, %v174
  %v229 = vpack.c.b16 %v177, %v176
  %v230 = vpack.c.b16 %v179, %v178
  %v231 = vpack.c.b16 %v181, %v180
  %v232 = vpack.c.b16 %v183, %v182
  %v233 = vpack.c.b16 %v185, %v184
  %v234 = vpack.c.b16 %v187, %v186
  %v235 = vpack.c.b16 %v189, %v188
  %v236 = vpack.c.b16 %v191, %v190
  %v237 = vpack.c.b16 %v193, %v192
  %v238 = vpack.c.b16 %v195, %v194
  %v239 = vpack.c.b16 %v197, %v196
  %v240 = vpack.c.b16 %v199, %v198
  %v241 = vpack.c.b16 %v201, %v200
  %v242 = vpack.c.b16 %v203, %v202
  %v243 = vpack.c.b16 %v205, %v204
  %v244 = vpack.c.b16 %v207, %v206
  %v245 = vpack.c.b16 %v209, %v208
  %v246 = vpack.c.b16 %v211, %v210
  %v247 = vpack.c.b16 %v213, %v212
  %v248 = vpack.c.b16 %v215, %v214
  %v249 = vpack.c.b16 %v217, %v216
  %v254 = vunpack.c.l.b16 %v79
  %v255 = vunpack.c.l.b16 %v80
  %v256 = vunpack.c.l.b16 %v81
  %v257 = vunpack.c.l.b16 %v82
  %v258 = vpack.c.b16 %v255, %v254
  %v259 = vpack.c.b16 %v257, %v256
  %vm262 = vcmask 261120
  %v264 = vsel %vm262, %v218, 0
  %v267 = vsel %vm262, %v219, 0
  %v270 = vsel %vm262, %v220, 0
  %v273 = vsel %vm262, %v221, 0
  %v276 = vsel %vm262, %v222, 0
  %v279 = vsel %vm262, %v223, 0
  %v282 = vsel %vm262, %v224, 0
  %v285 = vsel %vm262, %v225, 0
  %v288 = vsel %vm262, %v226, 0
  %v291 = vsel %vm262, %v227, 0
  %v294 = vsel %vm262, %v228, 0
  %v297 = vsel %vm262, %v229, 0
  %v300 = vsel %vm262, %v230, 0
  %v303 = vsel %vm262, %v231, 0
  %v306 = vsel %vm262, %v232, 0
  %v309 = vsel %vm262, %v233, 0
  %v312 = vsel %vm262, %v234, 0
  %v315 = vsel %vm262, %v235, 0
  %v318 = vsel %vm262, %v236, 0
  %v321 = vsel %vm262, %v237, 0
  %v324 = vsel %vm262, %v238, 0
  %v327 = vsel %vm262, %v239, 0
  %v330 = vsel %vm262, %v240, 0
  %v333 = vsel %vm262, %v241, 0
  %v336 = vsel %vm262, %v242, 0
  %v339 = vsel %vm262, %v243, 0
  %v342 = vsel %vm262, %v244, 0
  %v345 = vsel %vm262, %v245, 0
  %v348 = vsel %vm262, %v246, 0
  %v351 = vsel %vm262, %v247, 0
  %v354 = vsel %vm262, %v248, 0
  %v357 = vsel %vm262, %v249, 0
  %359 = vmatprep.subr.bf16.mxu0 0
  %360 = vmatpush1.bf16.msra.mxu0 %v258
  %361 = vmatprep.subr.bf16.mxu0 0
  %362 = vmatpush1.bf16.msra.mxu0 %v259
  %363 = vmatprep.subr.bf16.mxu0 0
  %364 = vmatpush1.bf16.msra.mxu0 0
  %365 = vmatprep.subr.bf16.mxu0 0
  %366 = vmatpush1.bf16.msra.mxu0 0
  %367 = vmatprep.subr.bf16.mxu0 0
  %368 = vmatpush1.bf16.msra.mxu0 0
  %369 = vmatprep.subr.bf16.mxu0 0
  %370 = vmatpush1.bf16.msra.mxu0 0
  %371 = vmatprep.subr.bf16.mxu0 0
  %372 = vmatpush1.bf16.msra.mxu0 0
  %373 = vmatprep.subr.bf16.mxu0 0
  %374 = vmatpush1.bf16.msra.mxu0 0
  %375 = vmatprep.subr.bf16.mxu0 0
  %376 = vmatpush1.bf16.msra.mxu0 0
  %377 = vmatprep.subr.bf16.mxu0 0
  %378 = vmatpush1.bf16.msra.mxu0 0
  %379 = vmatprep.subr.bf16.mxu0 0
  %380 = vmatpush1.bf16.msra.mxu0 0
  %381 = vmatprep.subr.bf16.mxu0 0
  %382 = vmatpush1.bf16.msra.mxu0 0
  %383 = vmatprep.subr.bf16.mxu0 0
  %384 = vmatpush1.bf16.msra.mxu0 0
  %385 = vmatprep.subr.bf16.mxu0 0
  %386 = vmatpush1.bf16.msra.mxu0 0
  %387 = vmatprep.subr.bf16.mxu0 0
  %388 = vmatpush1.bf16.msra.mxu0 0
  %389 = vmatprep.subr.bf16.mxu0 0
  %390 = vmatpush1.bf16.msra.mxu0 0
  %391 = vmatprep.mubr.bf16.mxu0 0
  %392 = vmatmul.mubr.bf16.gmra.mrb[0].mxu0 %v264
  %v393 = vpop.f32.mrb[0].mxu0
  %v394 = vadd.f32 %v88, %v393
  %v395 = vpop.f32.mrb[0].mxu0
  %v396 = vpop.f32.mrb[0].mxu0
  %v397 = vadd.f32 %v88, %v396
  %v398 = vpop.f32.mrb[0].mxu0
  %399 = vmatprep.mubr.bf16.mxu0 0
  %400 = vmatmul.mubr.bf16.gmra.mrb[0].mxu0 %v267
  %v401 = vpop.f32.mrb[0].mxu0
  %v402 = vadd.f32 %v88, %v401
  %v403 = vpop.f32.mrb[0].mxu0
  %v404 = vpop.f32.mrb[0].mxu0
  %v405 = vadd.f32 %v88, %v404
  %v406 = vpop.f32.mrb[0].mxu0
  %407 = vmatprep.mubr.bf16.mxu0 0
  %408 = vmatmul.mubr.bf16.gmra.mrb[0].mxu0 %v270
  %v409 = vpop.f32.mrb[0].mxu0
  %v410 = vadd.f32 %v88, %v409
  %v411 = vpop.f32.mrb[0].mxu0
  %v412 = vpop.f32.mrb[0].mxu0
  %v413 = vadd.f32 %v88, %v412
  %v414 = vpop.f32.mrb[0].mxu0
  %415 = vmatprep.mubr.bf16.mxu0 0
  %416 = vmatmul.mubr.bf16.gmra.mrb[0].mxu0 %v273
  %v417 = vpop.f32.mrb[0].mxu0
  %v418 = vadd.f32 %v88, %v417
  %v419 = vpop.f32.mrb[0].mxu0
  %v420 = vpop.f32.mrb[0].mxu0
  %v421 = vadd.f32 %v88, %v420
  %v422 = vpop.f32.mrb[0].mxu0
  %423 = vmatprep.mubr.bf16.mxu0 0
  %424 = vmatmul.mubr.bf16.gmra.mrb[0].mxu0 %v276
  %v425 = vpop.f32.mrb[0].mxu0
  %v426 = vadd.f32 %v88, %v425
  %v427 = vpop.f32.mrb[0].mxu0
  %v428 = vpop.f32.mrb[0].mxu0
  %v429 = vadd.f32 %v88, %v428
  %v430 = vpop.f32.mrb[0].mxu0
  %431 = vmatprep.mubr.bf16.mxu0 0
  %432 = vmatmul.mubr.bf16.gmra.mrb[0].mxu0 %v279
  %v433 = vpop.f32.mrb[0].mxu0
  %v434 = vadd.f32 %v88, %v433
  %v435 = vpop.f32.mrb[0].mxu0
  %v436 = vpop.f32.mrb[0].mxu0
  %v437 = vadd.f32 %v88, %v436
  %v438 = vpop.f32.mrb[0].mxu0
  %439 = vmatprep.mubr.bf16.mxu0 0
  %440 = vmatmul.mubr.bf16.gmra.mrb[0].mxu0 %v282
  %v441 = vpop.f32.mrb[0].mxu0
  %v442 = vadd.f32 %v88, %v441
  %v443 = vpop.f32.mrb[0].mxu0
  %v444 = vpop.f32.mrb[0].mxu0
  %v445 = vadd.f32 %v88, %v444
  %v446 = vpop.f32.mrb[0].mxu0
  %447 = vmatprep.mubr.bf16.mxu0 0
  %448 = vmatmul.mubr.bf16.gmra.mrb[0].mxu0 %v285
  %v449 = vpop.f32.mrb[0].mxu0
  %v450 = vadd.f32 %v88, %v449
  %v451 = vpop.f32.mrb[0].mxu0
  %v452 = vpop.f32.mrb[0].mxu0
  %v453 = vadd.f32 %v88, %v452
  %v454 = vpop.f32.mrb[0].mxu0
  %455 = vmatprep.mubr.bf16.mxu0 0
  %456 = vmatmul.mubr.bf16.gmra.mrb[0].mxu0 %v288
  %v457 = vpop.f32.mrb[0].mxu0
  %v458 = vadd.f32 %v88, %v457
  %v459 = vpop.f32.mrb[0].mxu0
  %v460 = vpop.f32.mrb[0].mxu0
  %v461 = vadd.f32 %v88, %v460
  %v462 = vpop.f32.mrb[0].mxu0
  %463 = vmatprep.mubr.bf16.mxu0 0
  %464 = vmatmul.mubr.bf16.gmra.mrb[0].mxu0 %v291
  %v465 = vpop.f32.mrb[0].mxu0
  %v466 = vadd.f32 %v88, %v465
  %v467 = vpop.f32.mrb[0].mxu0
  %v468 = vpop.f32.mrb[0].mxu0
  %v469 = vadd.f32 %v88, %v468
  %v470 = vpop.f32.mrb[0].mxu0
  %471 = vmatprep.mubr.bf16.mxu0 0
  %472 = vmatmul.mubr.bf16.gmra.mrb[0].mxu0 %v294
  %v473 = vpop.f32.mrb[0].mxu0
  %v474 = vadd.f32 %v88, %v473
  %v475 = vpop.f32.mrb[0].mxu0
  %v476 = vpop.f32.mrb[0].mxu0
  %v477 = vadd.f32 %v88, %v476
  %v478 = vpop.f32.mrb[0].mxu0
  %479 = vmatprep.mubr.bf16.mxu0 0
  %480 = vmatmul.mubr.bf16.gmra.mrb[0].mxu0 %v297
  %v481 = vpop.f32.mrb[0].mxu0
  %v482 = vadd.f32 %v88, %v481
  %v483 = vpop.f32.mrb[0].mxu0
  %v484 = vpop.f32.mrb[0].mxu0
  %v485 = vadd.f32 %v88, %v484
  %v486 = vpop.f32.mrb[0].mxu0
  %487 = vmatprep.mubr.bf16.mxu0 0
  %488 = vmatmul.mubr.bf16.gmra.mrb[0].mxu0 %v300
  %v489 = vpop.f32.mrb[0].mxu0
  %v490 = vadd.f32 %v88, %v489
  %v491 = vpop.f32.mrb[0].mxu0
  %v492 = vpop.f32.mrb[0].mxu0
  %v493 = vadd.f32 %v88, %v492
  %v494 = vpop.f32.mrb[0].mxu0
  %495 = vmatprep.mubr.bf16.mxu0 0
  %496 = vmatmul.mubr.bf16.gmra.mrb[0].mxu0 %v303
  %v497 = vpop.f32.mrb[0].mxu0
  %v498 = vadd.f32 %v88, %v497
  %v499 = vpop.f32.mrb[0].mxu0
  %v500 = vpop.f32.mrb[0].mxu0
  %v501 = vadd.f32 %v88, %v500
  %v502 = vpop.f32.mrb[0].mxu0
  %503 = vmatprep.mubr.bf16.mxu0 0
  %504 = vmatmul.mubr.bf16.gmra.mrb[0].mxu0 %v306
  %v505 = vpop.f32.mrb[0].mxu0
  %v506 = vadd.f32 %v88, %v505
  %v507 = vpop.f32.mrb[0].mxu0
  %v508 = vpop.f32.mrb[0].mxu0
  %v509 = vadd.f32 %v88, %v508
  %v510 = vpop.f32.mrb[0].mxu0
  %511 = vmatprep.mubr.bf16.mxu0 0
  %512 = vmatmul.mubr.bf16.gmra.mrb[0].mxu0 %v309
  %v513 = vpop.f32.mrb[0].mxu0
  %v514 = vadd.f32 %v88, %v513
  %v515 = vpop.f32.mrb[0].mxu0
  %v516 = vpop.f32.mrb[0].mxu0
  %v517 = vadd.f32 %v88, %v516
  %v518 = vpop.f32.mrb[0].mxu0
  %519 = vmatprep.mubr.bf16.mxu0 0
  %520 = vmatmul.mubr.bf16.gmra.mrb[0].mxu0 %v312
  %v521 = vpop.f32.mrb[0].mxu0
  %v522 = vadd.f32 %v88, %v521
  %v523 = vpop.f32.mrb[0].mxu0
  %v524 = vpop.f32.mrb[0].mxu0
  %v525 = vadd.f32 %v88, %v524
  %v526 = vpop.f32.mrb[0].mxu0
  %527 = vmatprep.mubr.bf16.mxu0 0
  %528 = vmatmul.mubr.bf16.gmra.mrb[0].mxu0 %v315
  %v529 = vpop.f32.mrb[0].mxu0
  %v530 = vadd.f32 %v88, %v529
  %v531 = vpop.f32.mrb[0].mxu0
  %v532 = vpop.f32.mrb[0].mxu0
  %v533 = vadd.f32 %v88, %v532
  %v534 = vpop.f32.mrb[0].mxu0
  %535 = vmatprep.mubr.bf16.mxu0 0
  %536 = vmatmul.mubr.bf16.gmra.mrb[0].mxu0 %v318
  %v537 = vpop.f32.mrb[0].mxu0
  %v538 = vadd.f32 %v88, %v537
  %v539 = vpop.f32.mrb[0].mxu0
  %v540 = vpop.f32.mrb[0].mxu0
  %v541 = vadd.f32 %v88, %v540
  %v542 = vpop.f32.mrb[0].mxu0
  %543 = vmatprep.mubr.bf16.mxu0 0
  %544 = vmatmul.mubr.bf16.gmra.mrb[0].mxu0 %v321
  %v545 = vpop.f32.mrb[0].mxu0
  %v546 = vadd.f32 %v88, %v545
  %v547 = vpop.f32.mrb[0].mxu0
  %v548 = vpop.f32.mrb[0].mxu0
  %v549 = vadd.f32 %v88, %v548
  %v550 = vpop.f32.mrb[0].mxu0
  %551 = vmatprep.mubr.bf16.mxu0 0
  %552 = vmatmul.mubr.bf16.gmra.mrb[0].mxu0 %v324
  %v553 = vpop.f32.mrb[0].mxu0
  %v554 = vadd.f32 %v88, %v553
  %v555 = vpop.f32.mrb[0].mxu0
  %v556 = vpop.f32.mrb[0].mxu0
  %v557 = vadd.f32 %v88, %v556
  %v558 = vpop.f32.mrb[0].mxu0
  %559 = vmatprep.mubr.bf16.mxu0 0
  %560 = vmatmul.mubr.bf16.gmra.mrb[0].mxu0 %v327
  %v561 = vpop.f32.mrb[0].mxu0
  %v562 = vadd.f32 %v88, %v561
  %v563 = vpop.f32.mrb[0].mxu0
  %v564 = vpop.f32.mrb[0].mxu0
  %v565 = vadd.f32 %v88, %v564
  %v566 = vpop.f32.mrb[0].mxu0
  %567 = vmatprep.mubr.bf16.mxu0 0
  %568 = vmatmul.mubr.bf16.gmra.mrb[0].mxu0 %v330
  %v569 = vpop.f32.mrb[0].mxu0
  %v570 = vadd.f32 %v88, %v569
  %v571 = vpop.f32.mrb[0].mxu0
  %v572 = vpop.f32.mrb[0].mxu0
  %v573 = vadd.f32 %v88, %v572
  %v574 = vpop.f32.mrb[0].mxu0
  %575 = vmatprep.mubr.bf16.mxu0 0
  %576 = vmatmul.mubr.bf16.gmra.mrb[0].mxu0 %v333
  %v577 = vpop.f32.mrb[0].mxu0
  %v578 = vadd.f32 %v88, %v577
  %v579 = vpop.f32.mrb[0].mxu0
  %v580 = vpop.f32.mrb[0].mxu0
  %v581 = vadd.f32 %v88, %v580
  %v582 = vpop.f32.mrb[0].mxu0
  %583 = vmatprep.mubr.bf16.mxu0 0
  %584 = vmatmul.mubr.bf16.gmra.mrb[0].mxu0 %v336
  %v585 = vpop.f32.mrb[0].mxu0
  %v586 = vadd.f32 %v88, %v585
  %v587 = vpop.f32.mrb[0].mxu0
  %v588 = vpop.f32.mrb[0].mxu0
  %v589 = vadd.f32 %v88, %v588
  %v590 = vpop.f32.mrb[0].mxu0
  %591 = vmatprep.mubr.bf16.mxu0 0
  %592 = vmatmul.mubr.bf16.gmra.mrb[0].mxu0 %v339
  %v593 = vpop.f32.mrb[0].mxu0
  %v594 = vadd.f32 %v88, %v593
  %v595 = vpop.f32.mrb[0].mxu0
  %v596 = vpop.f32.mrb[0].mxu0
  %v597 = vadd.f32 %v88, %v596
  %v598 = vpop.f32.mrb[0].mxu0
  %599 = vmatprep.mubr.bf16.mxu0 0
  %600 = vmatmul.mubr.bf16.gmra.mrb[0].mxu0 %v342
  %v601 = vpop.f32.mrb[0].mxu0
  %v602 = vadd.f32 %v88, %v601
  %v603 = vpop.f32.mrb[0].mxu0
  %v604 = vpop.f32.mrb[0].mxu0
  %v605 = vadd.f32 %v88, %v604
  %v606 = vpop.f32.mrb[0].mxu0
  %607 = vmatprep.mubr.bf16.mxu0 0
  %608 = vmatmul.mubr.bf16.gmra.mrb[0].mxu0 %v345
  %v609 = vpop.f32.mrb[0].mxu0
  %v610 = vadd.f32 %v88, %v609
  %v611 = vpop.f32.mrb[0].mxu0
  %v612 = vpop.f32.mrb[0].mxu0
  %v613 = vadd.f32 %v88, %v612
  %v614 = vpop.f32.mrb[0].mxu0
  %615 = vmatprep.mubr.bf16.mxu0 0
  %616 = vmatmul.mubr.bf16.gmra.mrb[0].mxu0 %v348
  %v617 = vpop.f32.mrb[0].mxu0
  %v618 = vadd.f32 %v88, %v617
  %v619 = vpop.f32.mrb[0].mxu0
  %v620 = vpop.f32.mrb[0].mxu0
  %v621 = vadd.f32 %v88, %v620
  %v622 = vpop.f32.mrb[0].mxu0
  %623 = vmatprep.mubr.bf16.mxu0 0
  %624 = vmatmul.mubr.bf16.gmra.mrb[0].mxu0 %v351
  %v625 = vpop.f32.mrb[0].mxu0
  %v626 = vadd.f32 %v88, %v625
  %v627 = vpop.f32.mrb[0].mxu0
  %v628 = vpop.f32.mrb[0].mxu0
  %v629 = vadd.f32 %v88, %v628
  %v630 = vpop.f32.mrb[0].mxu0
  %631 = vmatprep.mubr.bf16.mxu0 0
  %632 = vmatmul.mubr.bf16.gmra.mrb[0].mxu0 %v354
  %v633 = vpop.f32.mrb[0].mxu0
  %v634 = vadd.f32 %v88, %v633
  %v635 = vpop.f32.mrb[0].mxu0
  %v636 = vpop.f32.mrb[0].mxu0
  %v637 = vadd.f32 %v88, %v636
  %v638 = vpop.f32.mrb[0].mxu0
  %639 = vmatprep.mubr.bf16.mxu0 0
  %640 = vmatmul.mubr.bf16.gmra.mrb[0].mxu0 %v357
  %v641 = vpop.f32.mrb[0].mxu0
  %v642 = vadd.f32 %v88, %v641
  %v643 = vpop.f32.mrb[0].mxu0
  %v644 = vpop.f32.mrb[0].mxu0
  %v645 = vadd.f32 %v88, %v644
  %v646 = vpop.f32.mrb[0].mxu0
  %647 = vdwg.mxu0
  %v648 = vmax.f32 %v394, 0.0
  %v649 = vmax.f32 %v397, 0.0
  %v650 = vmax.f32 %v402, 0.0
  %v651 = vmax.f32 %v405, 0.0
  %v652 = vmax.f32 %v410, 0.0
  %v653 = vmax.f32 %v413, 0.0
  %v654 = vmax.f32 %v418, 0.0
  %v655 = vmax.f32 %v421, 0.0
  %v656 = vmax.f32 %v426, 0.0
  %v657 = vmax.f32 %v429, 0.0
  %v658 = vmax.f32 %v434, 0.0
  %v659 = vmax.f32 %v437, 0.0
  %v660 = vmax.f32 %v442, 0.0
  %v661 = vmax.f32 %v445, 0.0
  %v662 = vmax.f32 %v450, 0.0
  %v663 = vmax.f32 %v453, 0.0
  %v664 = vmax.f32 %v458, 0.0
  %v665 = vmax.f32 %v461, 0.0
  %v666 = vmax.f32 %v466, 0.0
  %v667 = vmax.f32 %v469, 0.0
  %v668 = vmax.f32 %v474, 0.0
  %v669 = vmax.f32 %v477, 0.0
  %v670 = vmax.f32 %v482, 0.0
  %v671 = vmax.f32 %v485, 0.0
  %v672 = vmax.f32 %v490, 0.0
  %v673 = vmax.f32 %v493, 0.0
  %v674 = vmax.f32 %v498, 0.0
  %v675 = vmax.f32 %v501, 0.0
  %v676 = vmax.f32 %v506, 0.0
  %v677 = vmax.f32 %v509, 0.0
  %v678 = vmax.f32 %v514, 0.0
  %v679 = vmax.f32 %v517, 0.0
  %v680 = vmax.f32 %v522, 0.0
  %v681 = vmax.f32 %v525, 0.0
  %v682 = vmax.f32 %v530, 0.0
  %v683 = vmax.f32 %v533, 0.0
  %v684 = vmax.f32 %v538, 0.0
  %v685 = vmax.f32 %v541, 0.0
  %v686 = vmax.f32 %v546, 0.0
  %v687 = vmax.f32 %v549, 0.0
  %v688 = vmax.f32 %v554, 0.0
  %v689 = vmax.f32 %v557, 0.0
  %v690 = vmax.f32 %v562, 0.0
  %v691 = vmax.f32 %v565, 0.0
  %v692 = vmax.f32 %v570, 0.0
  %v693 = vmax.f32 %v573, 0.0
  %v694 = vmax.f32 %v578, 0.0
  %v695 = vmax.f32 %v581, 0.0
  %v696 = vmax.f32 %v586, 0.0
  %v697 = vmax.f32 %v589, 0.0
  %v698 = vmax.f32 %v594, 0.0
  %v699 = vmax.f32 %v597, 0.0
  %v700 = vmax.f32 %v602, 0.0
  %v701 = vmax.f32 %v605, 0.0
  %v702 = vmax.f32 %v610, 0.0
  %v703 = vmax.f32 %v613, 0.0
  %v704 = vmax.f32 %v618, 0.0
  %v705 = vmax.f32 %v621, 0.0
  %v706 = vmax.f32 %v626, 0.0
  %v707 = vmax.f32 %v629, 0.0
  %v708 = vmax.f32 %v634, 0.0
  %v709 = vmax.f32 %v637, 0.0
  %v710 = vmax.f32 %v642, 0.0
  %v711 = vmax.f32 %v645, 0.0
  %v712 = vpack.c.bf16 %v649, %v648
  %v713 = vpack.c.bf16 %v651, %v650
  %v714 = vpack.c.bf16 %v653, %v652
  %v715 = vpack.c.bf16 %v655, %v654
  %v716 = vpack.c.bf16 %v657, %v656
  %v717 = vpack.c.bf16 %v659, %v658
  %v718 = vpack.c.bf16 %v661, %v660
  %v719 = vpack.c.bf16 %v663, %v662
  %v720 = vpack.c.bf16 %v665, %v664
  %v721 = vpack.c.bf16 %v667, %v666
  %v722 = vpack.c.bf16 %v669, %v668
  %v723 = vpack.c.bf16 %v671, %v670
  %v724 = vpack.c.bf16 %v673, %v672
  %v725 = vpack.c.bf16 %v675, %v674
  %v726 = vpack.c.bf16 %v677, %v676
  %v727 = vpack.c.bf16 %v679, %v678
  %v728 = vpack.c.bf16 %v681, %v680
  %v729 = vpack.c.bf16 %v683, %v682
  %v730 = vpack.c.bf16 %v685, %v684
  %v731 = vpack.c.bf16 %v687, %v686
  %v732 = vpack.c.bf16 %v689, %v688
  %v733 = vpack.c.bf16 %v691, %v690
  %v734 = vpack.c.bf16 %v693, %v692
  %v735 = vpack.c.bf16 %v695, %v694
  %v736 = vpack.c.bf16 %v697, %v696
  %v737 = vpack.c.bf16 %v699, %v698
  %v738 = vpack.c.bf16 %v701, %v700
  %v739 = vpack.c.bf16 %v703, %v702
  %v740 = vpack.c.bf16 %v705, %v704
  %v741 = vpack.c.bf16 %v707, %v706
  %v742 = vpack.c.bf16 %v709, %v708
  %v743 = vpack.c.bf16 %v711, %v710
  %v776 = vunpack.c.l.b16 %v712
  %v777 = vunpack.c.h.b16 %v712
  %v778 = vunpack.c.l.b16 %v713
  %v779 = vunpack.c.h.b16 %v713
  %v780 = vunpack.c.l.b16 %v714
  %v781 = vunpack.c.h.b16 %v714
  %v782 = vunpack.c.l.b16 %v715
  %v783 = vunpack.c.h.b16 %v715
  %v784 = vunpack.c.l.b16 %v716
  %v785 = vunpack.c.h.b16 %v716
  %v786 = vunpack.c.l.b16 %v717
  %v787 = vunpack.c.h.b16 %v717
  %v788 = vunpack.c.l.b16 %v718
  %v789 = vunpack.c.h.b16 %v718
  %v790 = vunpack.c.l.b16 %v719
  %v791 = vunpack.c.h.b16 %v719
  %v792 = vunpack.c.l.b16 %v720
  %v793 = vunpack.c.h.b16 %v720
  %v794 = vunpack.c.l.b16 %v721
  %v795 = vunpack.c.h.b16 %v721
  %v796 = vunpack.c.l.b16 %v722
  %v797 = vunpack.c.h.b16 %v722
  %v798 = vunpack.c.l.b16 %v723
  %v799 = vunpack.c.h.b16 %v723
  %v800 = vunpack.c.l.b16 %v724
  %v801 = vunpack.c.h.b16 %v724
  %v802 = vunpack.c.l.b16 %v725
  %v803 = vunpack.c.h.b16 %v725
  %v804 = vunpack.c.l.b16 %v726
  %v805 = vunpack.c.h.b16 %v726
  %v806 = vunpack.c.l.b16 %v727
  %v807 = vunpack.c.h.b16 %v727
  %v808 = vunpack.c.l.b16 %v728
  %v809 = vunpack.c.h.b16 %v728
  %v810 = vunpack.c.l.b16 %v729
  %v811 = vunpack.c.h.b16 %v729
  %v812 = vunpack.c.l.b16 %v730
  %v813 = vunpack.c.h.b16 %v730
  %v814 = vunpack.c.l.b16 %v731
  %v815 = vunpack.c.h.b16 %v731
  %v816 = vunpack.c.l.b16 %v732
  %v817 = vunpack.c.h.b16 %v732
  %v818 = vunpack.c.l.b16 %v733
  %v819 = vunpack.c.h.b16 %v733
  %v820 = vunpack.c.l.b16 %v734
  %v821 = vunpack.c.h.b16 %v734
  %v822 = vunpack.c.l.b16 %v735
  %v823 = vunpack.c.h.b16 %v735
  %v824 = vunpack.c.l.b16 %v736
  %v825 = vunpack.c.h.b16 %v736
  %v826 = vunpack.c.l.b16 %v737
  %v827 = vunpack.c.h.b16 %v737
  %v828 = vunpack.c.l.b16 %v738
  %v829 = vunpack.c.h.b16 %v738
  %v830 = vunpack.c.l.b16 %v739
  %v831 = vunpack.c.h.b16 %v739
  %v832 = vunpack.c.l.b16 %v740
  %v833 = vunpack.c.h.b16 %v740
  %v834 = vunpack.c.l.b16 %v741
  %v835 = vunpack.c.h.b16 %v741
  %v836 = vunpack.c.l.b16 %v742
  %v837 = vunpack.c.h.b16 %v742
  %v838 = vunpack.c.l.b16 %v743
  %v839 = vunpack.c.h.b16 %v743
  %v840 = vpack.c.b16 %v776, %v776
  %v841 = vpack.c.b16 %v777, %v777
  %v842 = vpack.c.b16 %v778, %v778
  %v843 = vpack.c.b16 %v779, %v779
  %v844 = vpack.c.b16 %v780, %v780
  %v845 = vpack.c.b16 %v781, %v781
  %v846 = vpack.c.b16 %v782, %v782
  %v847 = vpack.c.b16 %v783, %v783
  %v848 = vpack.c.b16 %v784, %v784
  %v849 = vpack.c.b16 %v785, %v785
  %v850 = vpack.c.b16 %v786, %v786
  %v851 = vpack.c.b16 %v787, %v787
  %v852 = vpack.c.b16 %v788, %v788
  %v853 = vpack.c.b16 %v789, %v789
  %v854 = vpack.c.b16 %v790, %v790
  %v855 = vpack.c.b16 %v791, %v791
  %v856 = vpack.c.b16 %v792, %v792
  %v857 = vpack.c.b16 %v793, %v793
  %v858 = vpack.c.b16 %v794, %v794
  %v859 = vpack.c.b16 %v795, %v795
  %v860 = vpack.c.b16 %v796, %v796
  %v861 = vpack.c.b16 %v797, %v797
  %v862 = vpack.c.b16 %v798, %v798
  %v863 = vpack.c.b16 %v799, %v799
  %v864 = vpack.c.b16 %v800, %v800
  %v865 = vpack.c.b16 %v801, %v801
  %v866 = vpack.c.b16 %v802, %v802
  %v867 = vpack.c.b16 %v803, %v803
  %v868 = vpack.c.b16 %v804, %v804
  %v869 = vpack.c.b16 %v805, %v805
  %v870 = vpack.c.b16 %v806, %v806
  %v871 = vpack.c.b16 %v807, %v807
  %v872 = vpack.c.b16 %v808, %v808
  %v873 = vpack.c.b16 %v809, %v809
  %v874 = vpack.c.b16 %v810, %v810
  %v875 = vpack.c.b16 %v811, %v811
  %v876 = vpack.c.b16 %v812, %v812
  %v877 = vpack.c.b16 %v813, %v813
  %v878 = vpack.c.b16 %v814, %v814
  %v879 = vpack.c.b16 %v815, %v815
  %v880 = vpack.c.b16 %v816, %v816
  %v881 = vpack.c.b16 %v817, %v817
  %v882 = vpack.c.b16 %v818, %v818
  %v883 = vpack.c.b16 %v819, %v819
  %v884 = vpack.c.b16 %v820, %v820
  %v885 = vpack.c.b16 %v821, %v821
  %v886 = vpack.c.b16 %v822, %v822
  %v887 = vpack.c.b16 %v823, %v823
  %v888 = vpack.c.b16 %v824, %v824
  %v889 = vpack.c.b16 %v825, %v825
  %v890 = vpack.c.b16 %v826, %v826
  %v891 = vpack.c.b16 %v827, %v827
  %v892 = vpack.c.b16 %v828, %v828
  %v893 = vpack.c.b16 %v829, %v829
  %v894 = vpack.c.b16 %v830, %v830
  %v895 = vpack.c.b16 %v831, %v831
  %v896 = vpack.c.b16 %v832, %v832
  %v897 = vpack.c.b16 %v833, %v833
  %v898 = vpack.c.b16 %v834, %v834
  %v899 = vpack.c.b16 %v835, %v835
  %v900 = vpack.c.b16 %v836, %v836
  %v901 = vpack.c.b16 %v837, %v837
  %v902 = vpack.c.b16 %v838, %v838
  %v903 = vpack.c.b16 %v839, %v839
  %968 = vst [vmem:[%s3] sm:$0xf] %v840
  %969 = vst [vmem:[%s3 + $0x4] sm:$0xf] %v841
  %970 = vst [vmem:[%s3 + $0x8] sm:$0xf] %v842
  %971 = vst [vmem:[%s3 + $0xc] sm:$0xf] %v843
  %972 = vst [vmem:[%s3 + $0x10] sm:$0xf] %v844
  %973 = vst [vmem:[%s3 + $0x14] sm:$0xf] %v845
  %974 = vst [vmem:[%s3 + $0x18] sm:$0xf] %v846
  %975 = vst [vmem:[%s3 + $0x1c] sm:$0xf] %v847
  %976 = vst [vmem:[%s3 + $0x20] sm:$0xf] %v848
  %977 = vst [vmem:[%s3 + $0x24] sm:$0xf] %v849
  %978 = vst [vmem:[%s3 + $0x28] sm:$0xf] %v850
  %979 = vst [vmem:[%s3 + $0x2c] sm:$0xf] %v851
  %980 = vst [vmem:[%s3 + $0x30] sm:$0xf] %v852
  %981 = vst [vmem:[%s3 + $0x34] sm:$0xf] %v853
  %982 = vst [vmem:[%s3 + $0x38] sm:$0xf] %v854
  %983 = vst [vmem:[%s3 + $0x3c] sm:$0xf] %v855
  %984 = vst [vmem:[%s3 + $0x40] sm:$0xf] %v856
  %985 = vst [vmem:[%s3 + $0x44] sm:$0xf] %v857
  %986 = vst [vmem:[%s3 + $0x48] sm:$0xf] %v858
  %987 = vst [vmem:[%s3 + $0x4c] sm:$0xf] %v859
  %988 = vst [vmem:[%s3 + $0x50] sm:$0xf] %v860
  %989 = vst [vmem:[%s3 + $0x54] sm:$0xf] %v861
  %990 = vst [vmem:[%s3 + $0x58] sm:$0xf] %v862
  %991 = vst [vmem:[%s3 + $0x5c] sm:$0xf] %v863
  %992 = vst [vmem:[%s3 + $0x60] sm:$0xf] %v864
  %993 = vst [vmem:[%s3 + $0x64] sm:$0xf] %v865
  %994 = vst [vmem:[%s3 + $0x68] sm:$0xf] %v866
  %995 = vst [vmem:[%s3 + $0x6c] sm:$0xf] %v867
  %996 = vst [vmem:[%s3 + $0x70] sm:$0xf] %v868
  %997 = vst [vmem:[%s3 + $0x74] sm:$0xf] %v869
  %998 = vst [vmem:[%s3 + $0x78] sm:$0xf] %v870
  %999 = vst [vmem:[%s3 + $0x7c] sm:$0xf] %v871
  %1000 = vst [vmem:[%s3 + $0x80] sm:$0xf] %v872
  %1001 = vst [vmem:[%s3 + $0x84] sm:$0xf] %v873
  %1002 = vst [vmem:[%s3 + $0x88] sm:$0xf] %v874
  %1003 = vst [vmem:[%s3 + $0x8c] sm:$0xf] %v875
  %1004 = vst [vmem:[%s3 + $0x90] sm:$0xf] %v876
  %1005 = vst [vmem:[%s3 + $0x94] sm:$0xf] %v877
  %1006 = vst [vmem:[%s3 + $0x98] sm:$0xf] %v878
  %1007 = vst [vmem:[%s3 + $0x9c] sm:$0xf] %v879
  %1008 = vst [vmem:[%s3 + $0xa0] sm:$0xf] %v880
  %1009 = vst [vmem:[%s3 + $0xa4] sm:$0xf] %v881
  %1010 = vst [vmem:[%s3 + $0xa8] sm:$0xf] %v882
  %1011 = vst [vmem:[%s3 + $0xac] sm:$0xf] %v883
  %1012 = vst [vmem:[%s3 + $0xb0] sm:$0xf] %v884
  %1013 = vst [vmem:[%s3 + $0xb4] sm:$0xf] %v885
  %1014 = vst [vmem:[%s3 + $0xb8] sm:$0xf] %v886
  %1015 = vst [vmem:[%s3 + $0xbc] sm:$0xf] %v887
  %1016 = vst [vmem:[%s3 + $0xc0] sm:$0xf] %v888
  %1017 = vst [vmem:[%s3 + $0xc4] sm:$0xf] %v889
  %1018 = vst [vmem:[%s3 + $0xc8] sm:$0xf] %v890
  %1019 = vst [vmem:[%s3 + $0xcc] sm:$0xf] %v891
  %1020 = vst [vmem:[%s3 + $0xd0] sm:$0xf] %v892
  %1021 = vst [vmem:[%s3 + $0xd4] sm:$0xf] %v893
  %1022 = vst [vmem:[%s3 + $0xd8] sm:$0xf] %v894
  %1023 = vst [vmem:[%s3 + $0xdc] sm:$0xf] %v895
  %1024 = vst [vmem:[%s3 + $0xe0] sm:$0xf] %v896
  %1025 = vst [vmem:[%s3 + $0xe4] sm:$0xf] %v897
  %1026 = vst [vmem:[%s3 + $0xe8] sm:$0xf] %v898
  %1027 = vst [vmem:[%s3 + $0xec] sm:$0xf] %v899
  %1028 = vst [vmem:[%s3 + $0xf0] sm:$0xf] %v900
  %1029 = vst [vmem:[%s3 + $0xf4] sm:$0xf] %v901
  %1030 = vst [vmem:[%s3 + $0xf8] sm:$0xf] %v902
  %1031 = vst [vmem:[%s3 + $0xfc] sm:$0xf] %v903
  // Predicated region
  $region14: #{class_network_forward.2} parent=0 // pred_check
    _
  $region15: #{class_network_forward.2} parent=0 // pred_check_branch
    %1033 = sbr.rel (0) target = $region17
  $region16: #{class_network_forward.2} parent=0 // pred_region
    _
  $region17: #{class_network_forward.2} parent=0 // pred_fallthru
    _
  // Predicated region
  $region18: #{class_network_forward.2} parent=0 // pred_check
    _
  $region19: #{class_network_forward.2} parent=0 // pred_check_branch
    %1035 = sbr.rel (0) target = $region21
  $region20: #{class_network_forward.2} parent=0 // pred_region
    _
  $region21: #{class_network_forward.2} parent=0 // pred_fallthru
    _

// kernel: class_network_forward.3
$region0: #{class_network_forward.3}
  #allocation0 [shape = 'u32[]', space=smem, size = 0x4, offset = 0x4, fixed_abs, tag = 'smem constant byte address 0x4 - core index']
  #allocation1 [shape = 'u32[144,128]{1,0:T(1,128)}', space=vmem, size = 0x12000, scoped, tag = 'internal scratch']
  #allocation2 [shape = 'f32[1,128]{1,0:T(1,128)}', space=vmem, size = 0x200, scoped, tag = 'scratch operand']
  %s0 = inlined_call_operand.vmem [shape: bf16[2,64,1152], index: 0, kind: input, shape index: {}]
  %s1 = inlined_call_operand.vmem [shape: bf16[1152,128], index: 1, kind: input, shape index: {}]
  %s2 = inlined_call_operand.vmem [shape: f32[1,128], index: 2, kind: input, shape index: {}]
  %s3 = inlined_call_operand.vmem [shape: f32[128,128], index: 3, kind: input, shape index: {}]
  %s4 = inlined_call_operand.vmem [shape: f32[1,128], index: 4, kind: input, shape index: {}]
  %s5 = inlined_call_operand.hbm [shape: f32[2,1,128], index: 5, kind: output, shape index: {}]
  %s6 = sld [smem:[#allocation0]]
  $region61: #{class_network_forward.3} parent=0
    _
  %s8 = ssub.s32 1, %s6
  %s9 = scalar_select 0, %s8, %s6
  $region1: #{class_network_forward.3} parent=0
    #allocation3 [shape = 'u8[1024]{0}', space=vmem, size = 0x400, scoped, tag = 'output window, operand 0']
    #allocation4 [shape = 's32[2]{0}', space=sflag, size = 0x8, scoped, tag = 'scoped memory for class_network_forward.3']
    %10 = vsyncpa [#allocation4], 0
    %s11 = scalar_lea.sflag [#allocation4], 1
    %12 = vsyncpa %s11, 0
    loop: start=0, step=1, limit=4
    $region2: #{class_network_forward.3} parent=1 // loop_pre_header
      _
    $region3: #{class_network_forward.3} parent=1 // loop_header
      %s14 = sphi 0, %s18
      %p15 = scmp.ge.s32.totalorder %s14, 4
      %s21 = sphi 0, %s33
      %s22 = sphi 0, %s29
      %s23 = sphi 0, %s21
      %s24 = sphi 0, %s22
      %s25 = sphi 0, %s23
      %s26 = sphi 0, %s24
      %s38 = sphi 0, %s40
      %s41 = sphi 0, %s38
      %s42 = sphi 0, %s41
      %s58 = sphi 0, %s42
      %s62 = sphi 0, %s62
      %s64 = sphi 0, %s62
      %s65 = sphi 0, %s64
      %s79 = sphi 0, %s65
      %s83 = sphi 0, %s83
      %s85 = sphi 0, %s83
      %s86 = sphi 0, %s85
      %s100 = sphi 0, %s86
      %s104 = sphi 0, %s104
      %s106 = sphi 0, %s104
      %s107 = sphi 0, %s106
      %s121 = sphi 0, %s107
      %s125 = sphi 0, %s125
      %s127 = sphi 0, %s125
      %s128 = sphi 0, %s127
      %s142 = sphi 0, %s128
      %s148 = sphi 0, %s150
      %s151 = sphi 0, %s148
      %s152 = sphi 0, %s151
      %s168 = sphi 0, %s152
    $region4: #{class_network_forward.3} parent=1 // loop_header_branch
      %17 = sbr.rel (%p15) target = $region8
    $region5: #{class_network_forward.3} parent=1 // loop_body
      %s19 = ssub.s32 %s14, 1
      %s20 = ssub.s32 %s14, 2
      %s27 = sadd.s32 1, %s22
      %p28 = scmp.ge.s32.totalorder %s27, 1
      %s29 = scalar_select %p28, 0, %s27
      %s30 = sadd.s32 1, %s21
      %s31 = scalar_select %p28, %s30, %s21
      %p32 = scmp.ge.s32.totalorder %s31, 2
      %s33 = scalar_select %p32, 0, %s31
      %s34 = ssub.s32 %s21, %s33
      %s35 = ssub.s32 %s22, %s29
      %s36 = sor.u32 %s34, %s35
      %p37 = scmp.eq.s32.totalorder %s36, 0
      %s39 = sadd.s32 %s38, 1
      %s40 = scalar_select %p37, %s38, %s39
      %p43 = pneg %p37
      %p44 = scmp.eq.s32.totalorder %s14, 1
      %p45 = por %p43, %p44
      %p46 = scmp.ne.s32.totalorder %s38, %s41
      %p47 = scmp.eq.s32.totalorder %s14, 0
      %p48 = por %p46, %p47
      %p49 = scmp.ne.s32.totalorder %s38, %s41
      %p50 = scmp.eq.s32.totalorder %s19, 1
      %p51 = por %p49, %p50
      %p52 = scmp.ne.s32.totalorder %s41, %s42
      %p53 = scmp.eq.s32.totalorder %s19, 0
      %p54 = por %p52, %p53
      %p55 = scmp.ne.s32.totalorder %s41, %s42
      %p56 = scmp.eq.s32.totalorder %s20, 1
      %p57 = por %p55, %p56
      %p59 = scmp.ne.s32.totalorder %s42, %s58
      %p60 = scmp.eq.s32.totalorder %s20, 0
      %p61 = por %p59, %p60
      %s63 = sadd.s32 %s62, 1
      %p66 = scmp.eq.s32.totalorder %s14, 1
      %p67 = scmp.ne.s32.totalorder %s62, %s64
      %p68 = scmp.eq.s32.totalorder %s14, 0
      %p69 = por %p67, %p68
      %p70 = scmp.ne.s32.totalorder %s62, %s64
      %p71 = scmp.eq.s32.totalorder %s19, 1
      %p72 = por %p70, %p71
      %p73 = scmp.ne.s32.totalorder %s64, %s65
      %p74 = scmp.eq.s32.totalorder %s19, 0
      %p75 = por %p73, %p74
      %p76 = scmp.ne.s32.totalorder %s64, %s65
      %p77 = scmp.eq.s32.totalorder %s20, 1
      %p78 = por %p76, %p77
      %p80 = scmp.ne.s32.totalorder %s65, %s79
      %p81 = scmp.eq.s32.totalorder %s20, 0
      %p82 = por %p80, %p81
      %s84 = sadd.s32 %s83, 1
      %p87 = scmp.eq.s32.totalorder %s14, 1
      %p88 = scmp.ne.s32.totalorder %s83, %s85
      %p89 = scmp.eq.s32.totalorder %s14, 0
      %p90 = por %p88, %p89
      %p91 = scmp.ne.s32.totalorder %s83, %s85
      %p92 = scmp.eq.s32.totalorder %s19, 1
      %p93 = por %p91, %p92
      %p94 = scmp.ne.s32.totalorder %s85, %s86
      %p95 = scmp.eq.s32.totalorder %s19, 0
      %p96 = por %p94, %p95
      %p97 = scmp.ne.s32.totalorder %s85, %s86
      %p98 = scmp.eq.s32.totalorder %s20, 1
      %p99 = por %p97, %p98
      %p101 = scmp.ne.s32.totalorder %s86, %s100
      %p102 = scmp.eq.s32.totalorder %s20, 0
      %p103 = por %p101, %p102
      %s105 = sadd.s32 %s104, 1
      %p108 = scmp.eq.s32.totalorder %s14, 1
      %p109 = scmp.ne.s32.totalorder %s104, %s106
      %p110 = scmp.eq.s32.totalorder %s14, 0
      %p111 = por %p109, %p110
      %p112 = scmp.ne.s32.totalorder %s104, %s106
      %p113 = scmp.eq.s32.totalorder %s19, 1
      %p114 = por %p112, %p113
      %p115 = scmp.ne.s32.totalorder %s106, %s107
      %p116 = scmp.eq.s32.totalorder %s19, 0
      %p117 = por %p115, %p116
      %p118 = scmp.ne.s32.totalorder %s106, %s107
      %p119 = scmp.eq.s32.totalorder %s20, 1
      %p120 = por %p118, %p119
      %p122 = scmp.ne.s32.totalorder %s107, %s121
      %p123 = scmp.eq.s32.totalorder %s20, 0
      %p124 = por %p122, %p123
      %s126 = sadd.s32 %s125, 1
      %p129 = scmp.eq.s32.totalorder %s14, 1
      %p130 = scmp.ne.s32.totalorder %s125, %s127
      %p131 = scmp.eq.s32.totalorder %s14, 0
      %p132 = por %p130, %p131
      %p133 = scmp.ne.s32.totalorder %s125, %s127
      %p134 = scmp.eq.s32.totalorder %s19, 1
      %p135 = por %p133, %p134
      %p136 = scmp.ne.s32.totalorder %s127, %s128
      %p137 = scmp.eq.s32.totalorder %s19, 0
      %p138 = por %p136, %p137
      %p139 = scmp.ne.s32.totalorder %s127, %s128
      %p140 = scmp.eq.s32.totalorder %s20, 1
      %p141 = por %p139, %p140
      %p143 = scmp.ne.s32.totalorder %s128, %s142
      %p144 = scmp.eq.s32.totalorder %s20, 0
      %p145 = por %p143, %p144
      %s146 = ssub.s32 %s21, %s33
      %p147 = scmp.eq.s32.totalorder %s146, 0
      %s149 = sadd.s32 %s148, 1
      %s150 = scalar_select %p147, %s148, %s149
      %p153 = pneg %p147
      %p154 = scmp.eq.s32.totalorder %s14, 1
      %p155 = por %p153, %p154
      %p156 = scmp.ne.s32.totalorder %s148, %s151
      %p157 = scmp.eq.s32.totalorder %s14, 0
      %p158 = por %p156, %p157
      %p159 = scmp.ne.s32.totalorder %s148, %s151
      %p160 = scmp.eq.s32.totalorder %s19, 1
      %p161 = por %p159, %p160
      %p162 = scmp.ne.s32.totalorder %s151, %s152
      %p163 = scmp.eq.s32.totalorder %s19, 0
      %p164 = por %p162, %p163
      %p165 = scmp.ne.s32.totalorder %s151, %s152
      %p166 = scmp.eq.s32.totalorder %s20, 1
      %p167 = por %p165, %p166
      %p169 = scmp.ne.s32.totalorder %s152, %s168
      %p170 = scmp.eq.s32.totalorder %s20, 0
      %p171 = por %p169, %p170
      %p172 = scmp.le.s32.totalorder 1, %s14
      %p173 = scmp.lt.s32.totalorder %s14, 3
      %p174 = pnand %p172, %p173
      %p175 = pneg %p174
      // Predicated region
      $region9: #{class_network_forward.3} parent=5 // pred_check
        _
      $region10: #{class_network_forward.3} parent=5 // pred_check_branch
        %177 = sbr.rel (%p174) target = $region12
      $region11: #{class_network_forward.3} parent=5 // pred_region
        %s178 = ssub.s32 %s14, 1
        // Predicated region
        $region13: #{class_network_forward.3} parent=11 // pred_check
          %p179 = pneg %p75
        $region14: #{class_network_forward.3} parent=11 // pred_check_branch
          %181 = sbr.rel (%p179) target = $region16
        $region15: #{class_network_forward.3} parent=11 // pred_region
          _
        $region16: #{class_network_forward.3} parent=11 // pred_fallthru
          _
        // Predicated region
        $region17: #{class_network_forward.3} parent=11 // pred_check
          %p182 = pneg %p96
        $region18: #{class_network_forward.3} parent=11 // pred_check_branch
          %184 = sbr.rel (%p182) target = $region20
        $region19: #{class_network_forward.3} parent=11 // pred_region
          _
        $region20: #{class_network_forward.3} parent=11 // pred_fallthru
          _
        // Predicated region
        $region21: #{class_network_forward.3} parent=11 // pred_check
          %p185 = pneg %p117
        $region22: #{class_network_forward.3} parent=11 // pred_check_branch
          %187 = sbr.rel (%p185) target = $region24
        $region23: #{class_network_forward.3} parent=11 // pred_region
          _
        $region24: #{class_network_forward.3} parent=11 // pred_fallthru
          _
        // Predicated region
        $region25: #{class_network_forward.3} parent=11 // pred_check
          %p188 = pneg %p138
        $region26: #{class_network_forward.3} parent=11 // pred_check_branch
          %190 = sbr.rel (%p188) target = $region28
        $region27: #{class_network_forward.3} parent=11 // pred_region
          _
        $region28: #{class_network_forward.3} parent=11 // pred_fallthru
          _
      $region12: #{class_network_forward.3} parent=5 // pred_fallthru
        _
      %p191 = scmp.lt.s32.totalorder %s14, 2
      // Predicated region
      $region29: #{class_network_forward.3} parent=5 // pred_check
        %p192 = pneg %p191
      $region30: #{class_network_forward.3} parent=5 // pred_check_branch
        %194 = sbr.rel (%p192) target = $region32
      $region31: #{class_network_forward.3} parent=5 // pred_region
        // Predicated region
        $region33: #{class_network_forward.3} parent=31 // pred_check
          %p195 = pneg %p48
        $region34: #{class_network_forward.3} parent=31 // pred_check_branch
          %197 = sbr.rel (%p195) target = $region36
        $region35: #{class_network_forward.3} parent=31 // pred_region
          %s198 = smul.u32 8, %s22
          %p199 = scmp.lt.s32.totalorder %s21, 1
          %s200 = scalar_select %p199, %s21, 1
          %p201 = scmp.lt.s32.totalorder %s198, 7
          %s202 = scalar_select %p201, %s198, 7
          %s203 = smul.addr %s202, 9
          %s204 = smul.addr %s200, 72
          %s205 = sadd.s32 %s203, %s204
          %s206 = smul.addr %s205, 4
          %s207 = scalar_lea.vmem %s0, %s206
          %s208 = smul.u32 8, %s22
        $region36: #{class_network_forward.3} parent=31 // pred_fallthru
          _
      $region32: #{class_network_forward.3} parent=5 // pred_fallthru
        _
      %p209 = scmp.le.s32.totalorder 1, %s14
      %p210 = scmp.lt.s32.totalorder %s14, 3
      %p211 = pnand %p209, %p210
      %p212 = pneg %p211
      // Predicated region
      $region37: #{class_network_forward.3} parent=5 // pred_check
        _
      $region38: #{class_network_forward.3} parent=5 // pred_check_branch
        %214 = sbr.rel (%p211) target = $region40
      $region39: #{class_network_forward.3} parent=5 // pred_region
        %s215 = ssub.s32 %s14, 1
        %s216 = smul.u32 8, %s24
        %p217 = scmp.lt.s32.totalorder %s23, 1
        %s218 = scalar_select %p217, %s23, 1
        %p219 = scmp.lt.s32.totalorder %s216, 7
        %s220 = scalar_select %p219, %s216, 7
        %s221 = smul.addr %s220, 9
        %s222 = smul.addr %s218, 72
        %s223 = sadd.s32 %s221, %s222
        %s224 = smul.addr %s223, 4
        %s225 = scalar_lea.vmem %s0, %s224
        %p226 = pneg %p54
        %p227 = pneg %p51
        %p228 = pneg %p75
        %p229 = pneg %p72
        %p230 = pneg %p96
        %p231 = pneg %p93
        %p232 = pneg %p117
        %p233 = pneg %p114
        %p234 = pneg %p138
        %p235 = pneg %p135
        %p236 = pneg %p164
        %p237 = pneg %p161
        %s238 = sand.u32 %s151, 1
        %s239 = scalar_lea.sflag [#allocation4], %s238
        %s240 = sand.u32 %s151, 1
        %s241 = scalar_lea.vmem [#allocation3], %s240
        %s242 = smul.u32 8, %s24
        %p243 = scmp.lt.s32.totalorder %s23, 1
        %s244 = scalar_select %p243, %s23, 1
        %p245 = scmp.lt.s32.totalorder %s242, 7
        %s246 = scalar_select %p245, %s242, 7
        %s247 = smul.addr %s246, 9
        %s248 = smul.addr %s244, 72
        %s249 = sadd.s32 %s247, %s248
        %s250 = smul.addr %s249, 4
        %s251 = scalar_lea.vmem %s0, %s250
        %s252 = smul.u32 8, %s24
        %p254 = scmp.eq.s32.totalorder %s24, 0
        // Predicated region
        $region41: #{class_network_forward.3} parent=39 // pred_check
          %p255 = pneg %p254
        $region42: #{class_network_forward.3} parent=39 // pred_check_branch
          %257 = sbr.rel (%p255) target = $region44
        $region43: #{class_network_forward.3} parent=39 // pred_region
          %258 = vst [vmem:[#allocation2] sm:$0x1] 0.0
        $region44: #{class_network_forward.3} parent=39 // pred_fallthru
          _
        %v259 = vld [vmem:[%s251] sm:$0xff]
        %v260 = vld [vmem:[%s251 + $0x8] sm:$0xff]
        %v261 = vld [vmem:[%s251 + $0x10] sm:$0xff]
        %v262 = vld [vmem:[%s251 + $0x18] sm:$0xff]
        %v263 = vld [vmem:[%s251 + $0x20] sm:$0xf]
        %v264 = vld [vmem:[%s251 + $0x24] sm:$0xff]
        %v265 = vld [vmem:[%s251 + $0x2c] sm:$0xff]
        %v266 = vld [vmem:[%s251 + $0x34] sm:$0xff]
        %v267 = vld [vmem:[%s251 + $0x3c] sm:$0xff]
        %v268 = vld [vmem:[%s251 + $0x44] sm:$0xf]
        %v269 = vld [vmem:[%s251 + $0x48] sm:$0xff]
        %v270 = vld [vmem:[%s251 + $0x50] sm:$0xff]
        %v271 = vld [vmem:[%s251 + $0x58] sm:$0xff]
        %v272 = vld [vmem:[%s251 + $0x60] sm:$0xff]
        %v273 = vld [vmem:[%s251 + $0x68] sm:$0xf]
        %v274 = vld [vmem:[%s251 + $0x6c] sm:$0xff]
        %v275 = vld [vmem:[%s251 + $0x74] sm:$0xff]
        %v276 = vld [vmem:[%s251 + $0x7c] sm:$0xff]
        %v277 = vld [vmem:[%s251 + $0x84] sm:$0xff]
        %v278 = vld [vmem:[%s251 + $0x8c] sm:$0xf]
        %v279 = vld [vmem:[%s251 + $0x90] sm:$0xff]
        %v280 = vld [vmem:[%s251 + $0x98] sm:$0xff]
        %v281 = vld [vmem:[%s251 + $0xa0] sm:$0xff]
        %v282 = vld [vmem:[%s251 + $0xa8] sm:$0xff]
        %v283 = vld [vmem:[%s251 + $0xb0] sm:$0xf]
        %v284 = vld [vmem:[%s251 + $0xb4] sm:$0xff]
        %v285 = vld [vmem:[%s251 + $0xbc] sm:$0xff]
        %v286 = vld [vmem:[%s251 + $0xc4] sm:$0xff]
        %v287 = vld [vmem:[%s251 + $0xcc] sm:$0xff]
        %v288 = vld [vmem:[%s251 + $0xd4] sm:$0xf]
        %v289 = vld [vmem:[%s251 + $0xd8] sm:$0xff]
        %v290 = vld [vmem:[%s251 + $0xe0] sm:$0xff]
        %v291 = vld [vmem:[%s251 + $0xe8] sm:$0xff]
        %v292 = vld [vmem:[%s251 + $0xf0] sm:$0xff]
        %v293 = vld [vmem:[%s251 + $0xf8] sm:$0xf]
        %v294 = vld [vmem:[%s251 + $0xfc] sm:$0xff]
        %v295 = vld [vmem:[%s251 + $0x104] sm:$0xff]
        %v296 = vld [vmem:[%s251 + $0x10c] sm:$0xff]
        %v297 = vld [vmem:[%s251 + $0x114] sm:$0xff]
        %v298 = vld [vmem:[%s251 + $0x11c] sm:$0xf]
        %v299 = vld [vmem:[%s1] sm:$0xf]
        %v300 = vld [vmem:[%s1 + $0x4] sm:$0xf]
        %v301 = vld [vmem:[%s1 + $0x8] sm:$0xf]
        %v302 = vld [vmem:[%s1 + $0xc] sm:$0xf]
        %v303 = vld [vmem:[%s1 + $0x10] sm:$0xf]
        %v304 = vld [vmem:[%s1 + $0x14] sm:$0xf]
        %v305 = vld [vmem:[%s1 + $0x18] sm:$0xf]
        %v306 = vld [vmem:[%s1 + $0x1c] sm:$0xf]
        %v307 = vld [vmem:[%s1 + $0x20] sm:$0xf]
        %v308 = vld [vmem:[%s1 + $0x24] sm:$0xf]
        %v309 = vld [vmem:[%s1 + $0x28] sm:$0xf]
        %v310 = vld [vmem:[%s1 + $0x2c] sm:$0xf]
        %v311 = vld [vmem:[%s1 + $0x30] sm:$0xf]
        %v312 = vld [vmem:[%s1 + $0x34] sm:$0xf]
        %v313 = vld [vmem:[%s1 + $0x38] sm:$0xf]
        %v314 = vld [vmem:[%s1 + $0x3c] sm:$0xf]
        %v315 = vld [vmem:[%s1 + $0x40] sm:$0xf]
        %v316 = vld [vmem:[%s1 + $0x44] sm:$0xf]
        %v317 = vld [vmem:[%s1 + $0x48] sm:$0xf]
        %v318 = vld [vmem:[%s1 + $0x4c] sm:$0xf]
        %v319 = vld [vmem:[%s1 + $0x50] sm:$0xf]
        %v320 = vld [vmem:[%s1 + $0x54] sm:$0xf]
        %v321 = vld [vmem:[%s1 + $0x58] sm:$0xf]
        %v322 = vld [vmem:[%s1 + $0x5c] sm:$0xf]
        %v323 = vld [vmem:[%s1 + $0x60] sm:$0xf]
        %v324 = vld [vmem:[%s1 + $0x64] sm:$0xf]
        %v325 = vld [vmem:[%s1 + $0x68] sm:$0xf]
        %v326 = vld [vmem:[%s1 + $0x6c] sm:$0xf]
        %v327 = vld [vmem:[%s1 + $0x70] sm:$0xf]
        %v328 = vld [vmem:[%s1 + $0x74] sm:$0xf]
        %v329 = vld [vmem:[%s1 + $0x78] sm:$0xf]
        %v330 = vld [vmem:[%s1 + $0x7c] sm:$0xf]
        %v331 = vld [vmem:[%s1 + $0x80] sm:$0xf]
        %v332 = vld [vmem:[%s1 + $0x84] sm:$0xf]
        %v333 = vld [vmem:[%s1 + $0x88] sm:$0xf]
        %v334 = vld [vmem:[%s1 + $0x8c] sm:$0xf]
        %v335 = vld [vmem:[%s1 + $0x90] sm:$0xf]
        %v336 = vld [vmem:[%s1 + $0x94] sm:$0xf]
        %v337 = vld [vmem:[%s1 + $0x98] sm:$0xf]
        %v338 = vld [vmem:[%s1 + $0x9c] sm:$0xf]
        %v339 = vld [vmem:[%s1 + $0xa0] sm:$0xf]
        %v340 = vld [vmem:[%s1 + $0xa4] sm:$0xf]
        %v341 = vld [vmem:[%s1 + $0xa8] sm:$0xf]
        %v342 = vld [vmem:[%s1 + $0xac] sm:$0xf]
        %v343 = vld [vmem:[%s1 + $0xb0] sm:$0xf]
        %v344 = vld [vmem:[%s1 + $0xb4] sm:$0xf]
        %v345 = vld [vmem:[%s1 + $0xb8] sm:$0xf]
        %v346 = vld [vmem:[%s1 + $0xbc] sm:$0xf]
        %v347 = vld [vmem:[%s1 + $0xc0] sm:$0xf]
        %v348 = vld [vmem:[%s1 + $0xc4] sm:$0xf]
        %v349 = vld [vmem:[%s1 + $0xc8] sm:$0xf]
        %v350 = vld [vmem:[%s1 + $0xcc] sm:$0xf]
        %v351 = vld [vmem:[%s1 + $0xd0] sm:$0xf]
        %v352 = vld [vmem:[%s1 + $0xd4] sm:$0xf]
        %v353 = vld [vmem:[%s1 + $0xd8] sm:$0xf]
        %v354 = vld [vmem:[%s1 + $0xdc] sm:$0xf]
        %v355 = vld [vmem:[%s1 + $0xe0] sm:$0xf]
        %v356 = vld [vmem:[%s1 + $0xe4] sm:$0xf]
        %v357 = vld [vmem:[%s1 + $0xe8] sm:$0xf]
        %v358 = vld [vmem:[%s1 + $0xec] sm:$0xf]
        %v359 = vld [vmem:[%s1 + $0xf0] sm:$0xf]
        %v360 = vld [vmem:[%s1 + $0xf4] sm:$0xf]
        %v361 = vld [vmem:[%s1 + $0xf8] sm:$0xf]
        %v362 = vld [vmem:[%s1 + $0xfc] sm:$0xf]
        %v363 = vld [vmem:[%s1 + $0x100] sm:$0xf]
        %v364 = vld [vmem:[%s1 + $0x104] sm:$0xf]
        %v365 = vld [vmem:[%s1 + $0x108] sm:$0xf]
        %v366 = vld [vmem:[%s1 + $0x10c] sm:$0xf]
        %v367 = vld [vmem:[%s1 + $0x110] sm:$0xf]
        %v368 = vld [vmem:[%s1 + $0x114] sm:$0xf]
        %v369 = vld [vmem:[%s1 + $0x118] sm:$0xf]
        %v370 = vld [vmem:[%s1 + $0x11c] sm:$0xf]
        %v371 = vld [vmem:[%s1 + $0x120] sm:$0xf]
        %v372 = vld [vmem:[%s1 + $0x124] sm:$0xf]
        %v373 = vld [vmem:[%s1 + $0x128] sm:$0xf]
        %v374 = vld [vmem:[%s1 + $0x12c] sm:$0xf]
        %v375 = vld [vmem:[%s1 + $0x130] sm:$0xf]
        %v376 = vld [vmem:[%s1 + $0x134] sm:$0xf]
        %v377 = vld [vmem:[%s1 + $0x138] sm:$0xf]
        %v378 = vld [vmem:[%s1 + $0x13c] sm:$0xf]
        %v379 = vld [vmem:[%s1 + $0x140] sm:$0xf]
        %v380 = vld [vmem:[%s1 + $0x144] sm:$0xf]
        %v381 = vld [vmem:[%s1 + $0x148] sm:$0xf]
        %v382 = vld [vmem:[%s1 + $0x14c] sm:$0xf]
        %v383 = vld [vmem:[%s1 + $0x150] sm:$0xf]
        %v384 = vld [vmem:[%s1 + $0x154] sm:$0xf]
        %v385 = vld [vmem:[%s1 + $0x158] sm:$0xf]
        %v386 = vld [vmem:[%s1 + $0x15c] sm:$0xf]
        %v387 = vld [vmem:[%s1 + $0x160] sm:$0xf]
        %v388 = vld [vmem:[%s1 + $0x164] sm:$0xf]
        %v389 = vld [vmem:[%s1 + $0x168] sm:$0xf]
        %v390 = vld [vmem:[%s1 + $0x16c] sm:$0xf]
        %v391 = vld [vmem:[%s1 + $0x170] sm:$0xf]
        %v392 = vld [vmem:[%s1 + $0x174] sm:$0xf]
        %v393 = vld [vmem:[%s1 + $0x178] sm:$0xf]
        %v394 = vld [vmem:[%s1 + $0x17c] sm:$0xf]
        %v395 = vld [vmem:[%s1 + $0x180] sm:$0xf]
        %v396 = vld [vmem:[%s1 + $0x184] sm:$0xf]
        %v397 = vld [vmem:[%s1 + $0x188] sm:$0xf]
        %v398 = vld [vmem:[%s1 + $0x18c] sm:$0xf]
        %v399 = vld [vmem:[%s1 + $0x190] sm:$0xf]
        %v400 = vld [vmem:[%s1 + $0x194] sm:$0xf]
        %v401 = vld [vmem:[%s1 + $0x198] sm:$0xf]
        %v402 = vld [vmem:[%s1 + $0x19c] sm:$0xf]
        %v403 = vld [vmem:[%s1 + $0x1a0] sm:$0xf]
        %v404 = vld [vmem:[%s1 + $0x1a4] sm:$0xf]
        %v405 = vld [vmem:[%s1 + $0x1a8] sm:$0xf]
        %v406 = vld [vmem:[%s1 + $0x1ac] sm:$0xf]
        %v407 = vld [vmem:[%s1 + $0x1b0] sm:$0xf]
        %v408 = vld [vmem:[%s1 + $0x1b4] sm:$0xf]
        %v409 = vld [vmem:[%s1 + $0x1b8] sm:$0xf]
        %v410 = vld [vmem:[%s1 + $0x1bc] sm:$0xf]
        %v411 = vld [vmem:[%s1 + $0x1c0] sm:$0xf]
        %v412 = vld [vmem:[%s1 + $0x1c4] sm:$0xf]
        %v413 = vld [vmem:[%s1 + $0x1c8] sm:$0xf]
        %v414 = vld [vmem:[%s1 + $0x1cc] sm:$0xf]
        %v415 = vld [vmem:[%s1 + $0x1d0] sm:$0xf]
        %v416 = vld [vmem:[%s1 + $0x1d4] sm:$0xf]
        %v417 = vld [vmem:[%s1 + $0x1d8] sm:$0xf]
        %v418 = vld [vmem:[%s1 + $0x1dc] sm:$0xf]
        %v419 = vld [vmem:[%s1 + $0x1e0] sm:$0xf]
        %v420 = vld [vmem:[%s1 + $0x1e4] sm:$0xf]
        %v421 = vld [vmem:[%s1 + $0x1e8] sm:$0xf]
        %v422 = vld [vmem:[%s1 + $0x1ec] sm:$0xf]
        %v423 = vld [vmem:[%s1 + $0x1f0] sm:$0xf]
        %v424 = vld [vmem:[%s1 + $0x1f4] sm:$0xf]
        %v425 = vld [vmem:[%s1 + $0x1f8] sm:$0xf]
        %v426 = vld [vmem:[%s1 + $0x1fc] sm:$0xf]
        %v427 = vld [vmem:[%s1 + $0x200] sm:$0xf]
        %v428 = vld [vmem:[%s1 + $0x204] sm:$0xf]
        %v429 = vld [vmem:[%s1 + $0x208] sm:$0xf]
        %v430 = vld [vmem:[%s1 + $0x20c] sm:$0xf]
        %v431 = vld [vmem:[%s1 + $0x210] sm:$0xf]
        %v432 = vld [vmem:[%s1 + $0x214] sm:$0xf]
        %v433 = vld [vmem:[%s1 + $0x218] sm:$0xf]
        %v434 = vld [vmem:[%s1 + $0x21c] sm:$0xf]
        %v435 = vld [vmem:[%s1 + $0x220] sm:$0xf]
        %v436 = vld [vmem:[%s1 + $0x224] sm:$0xf]
        %v437 = vld [vmem:[%s1 + $0x228] sm:$0xf]
        %v438 = vld [vmem:[%s1 + $0x22c] sm:$0xf]
        %v439 = vld [vmem:[%s1 + $0x230] sm:$0xf]
        %v440 = vld [vmem:[%s1 + $0x234] sm:$0xf]
        %v441 = vld [vmem:[%s1 + $0x238] sm:$0xf]
        %v442 = vld [vmem:[%s1 + $0x23c] sm:$0xf]
        %v443 = vld [vmem:[%s2] sm:$0x1]
        %v445 = vlaneseq
        %v446 = vshrl.u32 %v445, 7
        %v447 = vsub.s32 0, %v446
        %v448 = vrot.slane %v443, %v447
        %v490 = vunpack.c.l.b16 %v259
        %v491 = vunpack.c.h.b16 %v259
        %v492 = vunpack.c.l.b16 %v260
        %v493 = vunpack.c.h.b16 %v260
        %v494 = vunpack.c.l.b16 %v261
        %v495 = vunpack.c.h.b16 %v261
        %v496 = vunpack.c.l.b16 %v262
        %v497 = vunpack.c.h.b16 %v262
        %v498 = vunpack.c.l.b16 %v263
        %v499 = vunpack.c.l.b16 %v264
        %v500 = vunpack.c.h.b16 %v264
        %v501 = vunpack.c.l.b16 %v265
        %v502 = vunpack.c.h.b16 %v265
        %v503 = vunpack.c.l.b16 %v266
        %v504 = vunpack.c.h.b16 %v266
        %v505 = vunpack.c.l.b16 %v267
        %v506 = vunpack.c.h.b16 %v267
        %v507 = vunpack.c.l.b16 %v268
        %v508 = vunpack.c.l.b16 %v269
        %v509 = vunpack.c.h.b16 %v269
        %v510 = vunpack.c.l.b16 %v270
        %v511 = vunpack.c.h.b16 %v270
        %v512 = vunpack.c.l.b16 %v271
        %v513 = vunpack.c.h.b16 %v271
        %v514 = vunpack.c.l.b16 %v272
        %v515 = vunpack.c.h.b16 %v272
        %v516 = vunpack.c.l.b16 %v273
        %v517 = vunpack.c.l.b16 %v274
        %v518 = vunpack.c.h.b16 %v274
        %v519 = vunpack.c.l.b16 %v275
        %v520 = vunpack.c.h.b16 %v275
        %v521 = vunpack.c.l.b16 %v276
        %v522 = vunpack.c.h.b16 %v276
        %v523 = vunpack.c.l.b16 %v277
        %v524 = vunpack.c.h.b16 %v277
        %v525 = vunpack.c.l.b16 %v278
        %v526 = vunpack.c.l.b16 %v279
        %v527 = vunpack.c.h.b16 %v279
        %v528 = vunpack.c.l.b16 %v280
        %v529 = vunpack.c.h.b16 %v280
        %v530 = vunpack.c.l.b16 %v281
        %v531 = vunpack.c.h.b16 %v281
        %v532 = vunpack.c.l.b16 %v282
        %v533 = vunpack.c.h.b16 %v282
        %v534 = vunpack.c.l.b16 %v283
        %v535 = vunpack.c.l.b16 %v284
        %v536 = vunpack.c.h.b16 %v284
        %v537 = vunpack.c.l.b16 %v285
        %v538 = vunpack.c.h.b16 %v285
        %v539 = vunpack.c.l.b16 %v286
        %v540 = vunpack.c.h.b16 %v286
        %v541 = vunpack.c.l.b16 %v287
        %v542 = vunpack.c.h.b16 %v287
        %v543 = vunpack.c.l.b16 %v288
        %v544 = vunpack.c.l.b16 %v289
        %v545 = vunpack.c.h.b16 %v289
        %v546 = vunpack.c.l.b16 %v290
        %v547 = vunpack.c.h.b16 %v290
        %v548 = vunpack.c.l.b16 %v291
        %v549 = vunpack.c.h.b16 %v291
        %v550 = vunpack.c.l.b16 %v292
        %v551 = vunpack.c.h.b16 %v292
        %v552 = vunpack.c.l.b16 %v293
        %v553 = vunpack.c.l.b16 %v294
        %v554 = vunpack.c.h.b16 %v294
        %v555 = vunpack.c.l.b16 %v295
        %v556 = vunpack.c.h.b16 %v295
        %v557 = vunpack.c.l.b16 %v296
        %v558 = vunpack.c.h.b16 %v296
        %v559 = vunpack.c.l.b16 %v297
        %v560 = vunpack.c.h.b16 %v297
        %v561 = vunpack.c.l.b16 %v298
        %v562 = vpack.c.b16 %v499, %v490
        %v563 = vpack.c.b16 %v500, %v491
        %v564 = vpack.c.b16 %v501, %v492
        %v565 = vpack.c.b16 %v502, %v493
        %v566 = vpack.c.b16 %v503, %v494
        %v567 = vpack.c.b16 %v504, %v495
        %v568 = vpack.c.b16 %v505, %v496
        %v569 = vpack.c.b16 %v506, %v497
        %v570 = vpack.c.b16 %v507, %v498
        %v571 = vpack.c.b16 %v517, %v508
        %v572 = vpack.c.b16 %v518, %v509
        %v573 = vpack.c.b16 %v519, %v510
        %v574 = vpack.c.b16 %v520, %v511
        %v575 = vpack.c.b16 %v521, %v512
        %v576 = vpack.c.b16 %v522, %v513
        %v577 = vpack.c.b16 %v523, %v514
        %v578 = vpack.c.b16 %v524, %v515
        %v579 = vpack.c.b16 %v525, %v516
        %v580 = vpack.c.b16 %v535, %v526
        %v581 = vpack.c.b16 %v536, %v527
        %v582 = vpack.c.b16 %v537, %v528
        %v583 = vpack.c.b16 %v538, %v529
        %v584 = vpack.c.b16 %v539, %v530
        %v585 = vpack.c.b16 %v540, %v531
        %v586 = vpack.c.b16 %v541, %v532
        %v587 = vpack.c.b16 %v542, %v533
        %v588 = vpack.c.b16 %v543, %v534
        %v589 = vpack.c.b16 %v553, %v544
        %v590 = vpack.c.b16 %v554, %v545
        %v591 = vpack.c.b16 %v555, %v546
        %v592 = vpack.c.b16 %v556, %v547
        %v593 = vpack.c.b16 %v557, %v548
        %v594 = vpack.c.b16 %v558, %v549
        %v595 = vpack.c.b16 %v559, %v550
        %v596 = vpack.c.b16 %v560, %v551
        %v597 = vpack.c.b16 %v561, %v552
        %v778 = vunpack.c.l.b16 %v299
        %v779 = vunpack.c.l.b16 %v300
        %v780 = vunpack.c.l.b16 %v301
        %v781 = vunpack.c.l.b16 %v302
        %v782 = vunpack.c.l.b16 %v303
        %v783 = vunpack.c.l.b16 %v304
        %v784 = vunpack.c.l.b16 %v305
        %v785 = vunpack.c.l.b16 %v306
        %v786 = vunpack.c.l.b16 %v307
        %v787 = vunpack.c.l.b16 %v308
        %v788 = vunpack.c.l.b16 %v309
        %v789 = vunpack.c.l.b16 %v310
        %v790 = vunpack.c.l.b16 %v311
        %v791 = vunpack.c.l.b16 %v312
        %v792 = vunpack.c.l.b16 %v313
        %v793 = vunpack.c.l.b16 %v314
        %v794 = vunpack.c.l.b16 %v315
        %v795 = vunpack.c.l.b16 %v316
        %v796 = vunpack.c.l.b16 %v317
        %v797 = vunpack.c.l.b16 %v318
        %v798 = vunpack.c.l.b16 %v319
        %v799 = vunpack.c.l.b16 %v320
        %v800 = vunpack.c.l.b16 %v321
        %v801 = vunpack.c.l.b16 %v322
        %v802 = vunpack.c.l.b16 %v323
        %v803 = vunpack.c.l.b16 %v324
        %v804 = vunpack.c.l.b16 %v325
        %v805 = vunpack.c.l.b16 %v326
        %v806 = vunpack.c.l.b16 %v327
        %v807 = vunpack.c.l.b16 %v328
        %v808 = vunpack.c.l.b16 %v329
        %v809 = vunpack.c.l.b16 %v330
        %v810 = vunpack.c.l.b16 %v331
        %v811 = vunpack.c.l.b16 %v332
        %v812 = vunpack.c.l.b16 %v333
        %v813 = vunpack.c.l.b16 %v334
        %v814 = vunpack.c.l.b16 %v335
        %v815 = vunpack.c.l.b16 %v336
        %v816 = vunpack.c.l.b16 %v337
        %v817 = vunpack.c.l.b16 %v338
        %v818 = vunpack.c.l.b16 %v339
        %v819 = vunpack.c.l.b16 %v340
        %v820 = vunpack.c.l.b16 %v341
        %v821 = vunpack.c.l.b16 %v342
        %v822 = vunpack.c.l.b16 %v343
        %v823 = vunpack.c.l.b16 %v344
        %v824 = vunpack.c.l.b16 %v345
        %v825 = vunpack.c.l.b16 %v346
        %v826 = vunpack.c.l.b16 %v347
        %v827 = vunpack.c.l.b16 %v348
        %v828 = vunpack.c.l.b16 %v349
        %v829 = vunpack.c.l.b16 %v350
        %v830 = vunpack.c.l.b16 %v351
        %v831 = vunpack.c.l.b16 %v352
        %v832 = vunpack.c.l.b16 %v353
        %v833 = vunpack.c.l.b16 %v354
        %v834 = vunpack.c.l.b16 %v355
        %v835 = vunpack.c.l.b16 %v356
        %v836 = vunpack.c.l.b16 %v357
        %v837 = vunpack.c.l.b16 %v358
        %v838 = vunpack.c.l.b16 %v359
        %v839 = vunpack.c.l.b16 %v360
        %v840 = vunpack.c.l.b16 %v361
        %v841 = vunpack.c.l.b16 %v362
        %v842 = vunpack.c.l.b16 %v363
        %v843 = vunpack.c.l.b16 %v364
        %v844 = vunpack.c.l.b16 %v365
        %v845 = vunpack.c.l.b16 %v366
        %v846 = vunpack.c.l.b16 %v367
        %v847 = vunpack.c.l.b16 %v368
        %v848 = vunpack.c.l.b16 %v369
        %v849 = vunpack.c.l.b16 %v370
        %v850 = vunpack.c.l.b16 %v371
        %v851 = vunpack.c.l.b16 %v372
        %v852 = vunpack.c.l.b16 %v373
        %v853 = vunpack.c.l.b16 %v374
        %v854 = vunpack.c.l.b16 %v375
        %v855 = vunpack.c.l.b16 %v376
        %v856 = vunpack.c.l.b16 %v377
        %v857 = vunpack.c.l.b16 %v378
        %v858 = vunpack.c.l.b16 %v379
        %v859 = vunpack.c.l.b16 %v380
        %v860 = vunpack.c.l.b16 %v381
        %v861 = vunpack.c.l.b16 %v382
        %v862 = vunpack.c.l.b16 %v383
        %v863 = vunpack.c.l.b16 %v384
        %v864 = vunpack.c.l.b16 %v385
        %v865 = vunpack.c.l.b16 %v386
        %v866 = vunpack.c.l.b16 %v387
        %v867 = vunpack.c.l.b16 %v388
        %v868 = vunpack.c.l.b16 %v389
        %v869 = vunpack.c.l.b16 %v390
        %v870 = vunpack.c.l.b16 %v391
        %v871 = vunpack.c.l.b16 %v392
        %v872 = vunpack.c.l.b16 %v393
        %v873 = vunpack.c.l.b16 %v394
        %v874 = vunpack.c.l.b16 %v395
        %v875 = vunpack.c.l.b16 %v396
        %v876 = vunpack.c.l.b16 %v397
        %v877 = vunpack.c.l.b16 %v398
        %v878 = vunpack.c.l.b16 %v399
        %v879 = vunpack.c.l.b16 %v400
        %v880 = vunpack.c.l.b16 %v401
        %v881 = vunpack.c.l.b16 %v402
        %v882 = vunpack.c.l.b16 %v403
        %v883 = vunpack.c.l.b16 %v404
        %v884 = vunpack.c.l.b16 %v405
        %v885 = vunpack.c.l.b16 %v406
        %v886 = vunpack.c.l.b16 %v407
        %v887 = vunpack.c.l.b16 %v408
        %v888 = vunpack.c.l.b16 %v409
        %v889 = vunpack.c.l.b16 %v410
        %v890 = vunpack.c.l.b16 %v411
        %v891 = vunpack.c.l.b16 %v412
        %v892 = vunpack.c.l.b16 %v413
        %v893 = vunpack.c.l.b16 %v414
        %v894 = vunpack.c.l.b16 %v415
        %v895 = vunpack.c.l.b16 %v416
        %v896 = vunpack.c.l.b16 %v417
        %v897 = vunpack.c.l.b16 %v418
        %v898 = vunpack.c.l.b16 %v419
        %v899 = vunpack.c.l.b16 %v420
        %v900 = vunpack.c.l.b16 %v421
        %v901 = vunpack.c.l.b16 %v422
        %v902 = vunpack.c.l.b16 %v423
        %v903 = vunpack.c.l.b16 %v424
        %v904 = vunpack.c.l.b16 %v425
        %v905 = vunpack.c.l.b16 %v426
        %v906 = vunpack.c.l.b16 %v427
        %v907 = vunpack.c.l.b16 %v428
        %v908 = vunpack.c.l.b16 %v429
        %v909 = vunpack.c.l.b16 %v430
        %v910 = vunpack.c.l.b16 %v431
        %v911 = vunpack.c.l.b16 %v432
        %v912 = vunpack.c.l.b16 %v433
        %v913 = vunpack.c.l.b16 %v434
        %v914 = vunpack.c.l.b16 %v435
        %v915 = vunpack.c.l.b16 %v436
        %v916 = vunpack.c.l.b16 %v437
        %v917 = vunpack.c.l.b16 %v438
        %v918 = vunpack.c.l.b16 %v439
        %v919 = vunpack.c.l.b16 %v440
        %v920 = vunpack.c.l.b16 %v441
        %v921 = vunpack.c.l.b16 %v442
        %v922 = vpack.c.b16 %v779, %v778
        %v923 = vpack.c.b16 %v781, %v780
        %v924 = vpack.c.b16 %v783, %v782
        %v925 = vpack.c.b16 %v785, %v784
        %v926 = vpack.c.b16 %v787, %v786
        %v927 = vpack.c.b16 %v789, %v788
        %v928 = vpack.c.b16 %v791, %v790
        %v929 = vpack.c.b16 %v793, %v792
        %v930 = vpack.c.b16 %v795, %v794
        %v931 = vpack.c.b16 %v797, %v796
        %v932 = vpack.c.b16 %v799, %v798
        %v933 = vpack.c.b16 %v801, %v800
        %v934 = vpack.c.b16 %v803, %v802
        %v935 = vpack.c.b16 %v805, %v804
        %v936 = vpack.c.b16 %v807, %v806
        %v937 = vpack.c.b16 %v809, %v808
        %v938 = vpack.c.b16 %v811, %v810
        %v939 = vpack.c.b16 %v813, %v812
        %v940 = vpack.c.b16 %v815, %v814
        %v941 = vpack.c.b16 %v817, %v816
        %v942 = vpack.c.b16 %v819, %v818
        %v943 = vpack.c.b16 %v821, %v820
        %v944 = vpack.c.b16 %v823, %v822
        %v945 = vpack.c.b16 %v825, %v824
        %v946 = vpack.c.b16 %v827, %v826
        %v947 = vpack.c.b16 %v829, %v828
        %v948 = vpack.c.b16 %v831, %v830
        %v949 = vpack.c.b16 %v833, %v832
        %v950 = vpack.c.b16 %v835, %v834
        %v951 = vpack.c.b16 %v837, %v836
        %v952 = vpack.c.b16 %v839, %v838
        %v953 = vpack.c.b16 %v841, %v840
        %v954 = vpack.c.b16 %v843, %v842
        %v955 = vpack.c.b16 %v845, %v844
        %v956 = vpack.c.b16 %v847, %v846
        %v957 = vpack.c.b16 %v849, %v848
        %v958 = vpack.c.b16 %v851, %v850
        %v959 = vpack.c.b16 %v853, %v852
        %v960 = vpack.c.b16 %v855, %v854
        %v961 = vpack.c.b16 %v857, %v856
        %v962 = vpack.c.b16 %v859, %v858
        %v963 = vpack.c.b16 %v861, %v860
        %v964 = vpack.c.b16 %v863, %v862
        %v965 = vpack.c.b16 %v865, %v864
        %v966 = vpack.c.b16 %v867, %v866
        %v967 = vpack.c.b16 %v869, %v868
        %v968 = vpack.c.b16 %v871, %v870
        %v969 = vpack.c.b16 %v873, %v872
        %v970 = vpack.c.b16 %v875, %v874
        %v971 = vpack.c.b16 %v877, %v876
        %v972 = vpack.c.b16 %v879, %v878
        %v973 = vpack.c.b16 %v881, %v880
        %v974 = vpack.c.b16 %v883, %v882
        %v975 = vpack.c.b16 %v885, %v884
        %v976 = vpack.c.b16 %v887, %v886
        %v977 = vpack.c.b16 %v889, %v888
        %v978 = vpack.c.b16 %v891, %v890
        %v979 = vpack.c.b16 %v893, %v892
        %v980 = vpack.c.b16 %v895, %v894
        %v981 = vpack.c.b16 %v897, %v896
        %v982 = vpack.c.b16 %v899, %v898
        %v983 = vpack.c.b16 %v901, %v900
        %v984 = vpack.c.b16 %v903, %v902
        %v985 = vpack.c.b16 %v905, %v904
        %v986 = vpack.c.b16 %v907, %v906
        %v987 = vpack.c.b16 %v909, %v908
        %v988 = vpack.c.b16 %v911, %v910
        %v989 = vpack.c.b16 %v913, %v912
        %v990 = vpack.c.b16 %v915, %v914
        %v991 = vpack.c.b16 %v917, %v916
        %v992 = vpack.c.b16 %v919, %v918
        %v993 = vpack.c.b16 %v921, %v920
        %1066 = vmatprep.subr.bf16.mxu0 0
        %1067 = vmatpush1.bf16.msra.mxu0 %v922
        %1068 = vmatprep.subr.bf16.mxu0 0
        %1069 = vmatpush1.bf16.msra.mxu0 %v923
        %1070 = vmatprep.subr.bf16.mxu0 0
        %1071 = vmatpush1.bf16.msra.mxu0 %v924
        %1072 = vmatprep.subr.bf16.mxu0 0
        %1073 = vmatpush1.bf16.msra.mxu0 %v925
        %1074 = vmatprep.subr.bf16.mxu0 0
        %1075 = vmatpush1.bf16.msra.mxu0 %v926
        %1076 = vmatprep.subr.bf16.mxu0 0
        %1077 = vmatpush1.bf16.msra.mxu0 %v927
        %1078 = vmatprep.subr.bf16.mxu0 0
        %1079 = vmatpush1.bf16.msra.mxu0 %v928
        %1080 = vmatprep.subr.bf16.mxu0 0
        %1081 = vmatpush1.bf16.msra.mxu0 %v929
        %1082 = vmatprep.subr.bf16.mxu0 0
        %1083 = vmatpush1.bf16.msra.mxu0 %v930
        %1084 = vmatprep.subr.bf16.mxu0 0
        %1085 = vmatpush1.bf16.msra.mxu0 %v931
        %1086 = vmatprep.subr.bf16.mxu0 0
        %1087 = vmatpush1.bf16.msra.mxu0 %v932
        %1088 = vmatprep.subr.bf16.mxu0 0
        %1089 = vmatpush1.bf16.msra.mxu0 %v933
        %1090 = vmatprep.subr.bf16.mxu0 0
        %1091 = vmatpush1.bf16.msra.mxu0 %v934
        %1092 = vmatprep.subr.bf16.mxu0 0
        %1093 = vmatpush1.bf16.msra.mxu0 %v935
        %1094 = vmatprep.subr.bf16.mxu0 0
        %1095 = vmatpush1.bf16.msra.mxu0 %v936
        %1096 = vmatprep.subr.bf16.mxu0 0
        %1097 = vmatpush1.bf16.msra.mxu0 %v937
        %1098 = vmatprep.mubr.bf16.mxu0 %v563
        %1099 = vmatmul.mubr.bf16.gmra.mrb[0].mxu0 %v562
        %v1100 = vpop.f32.mrb[0].mxu0
        %v1101 = vadd.f32 %v448, %v1100
        %v1102 = vpop.f32.mrb[0].mxu0
        %v1103 = vpop.f32.mrb[0].mxu0
        %v1104 = vadd.f32 %v448, %v1103
        %v1105 = vpop.f32.mrb[0].mxu0
        %1106 = vmatprep.mubr.bf16.mxu0 %v572
        %1107 = vmatmul.mubr.bf16.gmra.mrb[0].mxu0 %v571
        %v1108 = vpop.f32.mrb[0].mxu0
        %v1109 = vadd.f32 %v448, %v1108
        %v1110 = vpop.f32.mrb[0].mxu0
        %v1111 = vpop.f32.mrb[0].mxu0
        %v1112 = vadd.f32 %v448, %v1111
        %v1113 = vpop.f32.mrb[0].mxu0
        %1114 = vmatprep.mubr.bf16.mxu0 %v581
        %1115 = vmatmul.mubr.bf16.gmra.mrb[0].mxu0 %v580
        %v1116 = vpop.f32.mrb[0].mxu0
        %v1117 = vadd.f32 %v448, %v1116
        %v1118 = vpop.f32.mrb[0].mxu0
        %v1119 = vpop.f32.mrb[0].mxu0
        %v1120 = vadd.f32 %v448, %v1119
        %v1121 = vpop.f32.mrb[0].mxu0
        %1122 = vmatprep.mubr.bf16.mxu0 %v590
        %1123 = vmatmul.mubr.bf16.gmra.mrb[0].mxu0 %v589
        %v1124 = vpop.f32.mrb[0].mxu0
        %v1125 = vadd.f32 %v448, %v1124
        %v1126 = vpop.f32.mrb[0].mxu0
        %v1127 = vpop.f32.mrb[0].mxu0
        %v1128 = vadd.f32 %v448, %v1127
        %v1129 = vpop.f32.mrb[0].mxu0
        %1130 = vdwg.mxu0
        %1131 = vmatprep.subr.bf16.mxu0 0
        %1132 = vmatpush1.bf16.msra.mxu0 %v938
        %1133 = vmatprep.subr.bf16.mxu0 0
        %1134 = vmatpush1.bf16.msra.mxu0 %v939
        %1135 = vmatprep.subr.bf16.mxu0 0
        %1136 = vmatpush1.bf16.msra.mxu0 %v940
        %1137 = vmatprep.subr.bf16.mxu0 0
        %1138 = vmatpush1.bf16.msra.mxu0 %v941
        %1139 = vmatprep.subr.bf16.mxu0 0
        %1140 = vmatpush1.bf16.msra.mxu0 %v942
        %1141 = vmatprep.subr.bf16.mxu0 0
        %1142 = vmatpush1.bf16.msra.mxu0 %v943
        %1143 = vmatprep.subr.bf16.mxu0 0
        %1144 = vmatpush1.bf16.msra.mxu0 %v944
        %1145 = vmatprep.subr.bf16.mxu0 0
        %1146 = vmatpush1.bf16.msra.mxu0 %v945
        %1147 = vmatprep.subr.bf16.mxu0 0
        %1148 = vmatpush1.bf16.msra.mxu0 %v946
        %1149 = vmatprep.subr.bf16.mxu0 0
        %1150 = vmatpush1.bf16.msra.mxu0 %v947
        %1151 = vmatprep.subr.bf16.mxu0 0
        %1152 = vmatpush1.bf16.msra.mxu0 %v948
        %1153 = vmatprep.subr.bf16.mxu0 0
        %1154 = vmatpush1.bf16.msra.mxu0 %v949
        %1155 = vmatprep.subr.bf16.mxu0 0
        %1156 = vmatpush1.bf16.msra.mxu0 %v950
        %1157 = vmatprep.subr.bf16.mxu0 0
        %1158 = vmatpush1.bf16.msra.mxu0 %v951
        %1159 = vmatprep.subr.bf16.mxu0 0
        %1160 = vmatpush1.bf16.msra.mxu0 %v952
        %1161 = vmatprep.subr.bf16.mxu0 0
        %1162 = vmatpush1.bf16.msra.mxu0 %v953
        %1163 = vmatprep.mubr.bf16.mxu0 %v565
        %1164 = vmatmul.mubr.bf16.gmra.mrb[0].mxu0 %v564
        %v1165 = vpop.f32.mrb[0].mxu0
        %v1166 = vadd.f32 %v1101, %v1165
        %v1167 = vpop.f32.mrb[0].mxu0
        %v1168 = vpop.f32.mrb[0].mxu0
        %v1169 = vadd.f32 %v1104, %v1168
        %v1170 = vpop.f32.mrb[0].mxu0
        %1171 = vmatprep.mubr.bf16.mxu0 %v574
        %1172 = vmatmul.mubr.bf16.gmra.mrb[0].mxu0 %v573
        %v1173 = vpop.f32.mrb[0].mxu0
        %v1174 = vadd.f32 %v1109, %v1173
        %v1175 = vpop.f32.mrb[0].mxu0
        %v1176 = vpop.f32.mrb[0].mxu0
        %v1177 = vadd.f32 %v1112, %v1176
        %v1178 = vpop.f32.mrb[0].mxu0
        %1179 = vmatprep.mubr.bf16.mxu0 %v583
        %1180 = vmatmul.mubr.bf16.gmra.mrb[0].mxu0 %v582
        %v1181 = vpop.f32.mrb[0].mxu0
        %v1182 = vadd.f32 %v1117, %v1181
        %v1183 = vpop.f32.mrb[0].mxu0
        %v1184 = vpop.f32.mrb[0].mxu0
        %v1185 = vadd.f32 %v1120, %v1184
        %v1186 = vpop.f32.mrb[0].mxu0
        %1187 = vmatprep.mubr.bf16.mxu0 %v592
        %1188 = vmatmul.mubr.bf16.gmra.mrb[0].mxu0 %v591
        %v1189 = vpop.f32.mrb[0].mxu0
        %v1190 = vadd.f32 %v1125, %v1189
        %v1191 = vpop.f32.mrb[0].mxu0
        %v1192 = vpop.f32.mrb[0].mxu0
        %v1193 = vadd.f32 %v1128, %v1192
        %v1194 = vpop.f32.mrb[0].mxu0
        %1195 = vdwg.mxu0
        %1196 = vmatprep.subr.bf16.mxu0 0
        %1197 = vmatpush1.bf16.msra.mxu0 %v954
        %1198 = vmatprep.subr.bf16.mxu0 0
        %1199 = vmatpush1.bf16.msra.mxu0 %v955
        %1200 = vmatprep.subr.bf16.mxu0 0
        %1201 = vmatpush1.bf16.msra.mxu0 %v956
        %1202 = vmatprep.subr.bf16.mxu0 0
        %1203 = vmatpush1.bf16.msra.mxu0 %v957
        %1204 = vmatprep.subr.bf16.mxu0 0
        %1205 = vmatpush1.bf16.msra.mxu0 %v958
        %1206 = vmatprep.subr.bf16.mxu0 0
        %1207 = vmatpush1.bf16.msra.mxu0 %v959
        %1208 = vmatprep.subr.bf16.mxu0 0
        %1209 = vmatpush1.bf16.msra.mxu0 %v960
        %1210 = vmatprep.subr.bf16.mxu0 0
        %1211 = vmatpush1.bf16.msra.mxu0 %v961
        %1212 = vmatprep.subr.bf16.mxu0 0
        %1213 = vmatpush1.bf16.msra.mxu0 %v962
        %1214 = vmatprep.subr.bf16.mxu0 0
        %1215 = vmatpush1.bf16.msra.mxu0 %v963
        %1216 = vmatprep.subr.bf16.mxu0 0
        %1217 = vmatpush1.bf16.msra.mxu0 %v964
        %1218 = vmatprep.subr.bf16.mxu0 0
        %1219 = vmatpush1.bf16.msra.mxu0 %v965
        %1220 = vmatprep.subr.bf16.mxu0 0
        %1221 = vmatpush1.bf16.msra.mxu0 %v966
        %1222 = vmatprep.subr.bf16.mxu0 0
        %1223 = vmatpush1.bf16.msra.mxu0 %v967
        %1224 = vmatprep.subr.bf16.mxu0 0
        %1225 = vmatpush1.bf16.msra.mxu0 %v968
        %1226 = vmatprep.subr.bf16.mxu0 0
        %1227 = vmatpush1.bf16.msra.mxu0 %v969
        %1228 = vmatprep.mubr.bf16.mxu0 %v567
        %1229 = vmatmul.mubr.bf16.gmra.mrb[0].mxu0 %v566
        %v1230 = vpop.f32.mrb[0].mxu0
        %v1231 = vadd.f32 %v1166, %v1230
        %v1232 = vpop.f32.mrb[0].mxu0
        %v1233 = vpop.f32.mrb[0].mxu0
        %v1234 = vadd.f32 %v1169, %v1233
        %v1235 = vpop.f32.mrb[0].mxu0
        %1236 = vmatprep.mubr.bf16.mxu0 %v576
        %1237 = vmatmul.mubr.bf16.gmra.mrb[0].mxu0 %v575
        %v1238 = vpop.f32.mrb[0].mxu0
        %v1239 = vadd.f32 %v1174, %v1238
        %v1240 = vpop.f32.mrb[0].mxu0
        %v1241 = vpop.f32.mrb[0].mxu0
        %v1242 = vadd.f32 %v1177, %v1241
        %v1243 = vpop.f32.mrb[0].mxu0
        %1244 = vmatprep.mubr.bf16.mxu0 %v585
        %1245 = vmatmul.mubr.bf16.gmra.mrb[0].mxu0 %v584
        %v1246 = vpop.f32.mrb[0].mxu0
        %v1247 = vadd.f32 %v1182, %v1246
        %v1248 = vpop.f32.mrb[0].mxu0
        %v1249 = vpop.f32.mrb[0].mxu0
        %v1250 = vadd.f32 %v1185, %v1249
        %v1251 = vpop.f32.mrb[0].mxu0
        %1252 = vmatprep.mubr.bf16.mxu0 %v594
        %1253 = vmatmul.mubr.bf16.gmra.mrb[0].mxu0 %v593
        %v1254 = vpop.f32.mrb[0].mxu0
        %v1255 = vadd.f32 %v1190, %v1254
        %v1256 = vpop.f32.mrb[0].mxu0
        %v1257 = vpop.f32.mrb[0].mxu0
        %v1258 = vadd.f32 %v1193, %v1257
        %v1259 = vpop.f32.mrb[0].mxu0
        %1260 = vdwg.mxu0
        %1261 = vmatprep.subr.bf16.mxu0 0
        %1262 = vmatpush1.bf16.msra.mxu0 %v970
        %1263 = vmatprep.subr.bf16.mxu0 0
        %1264 = vmatpush1.bf16.msra.mxu0 %v971
        %1265 = vmatprep.subr.bf16.mxu0 0
        %1266 = vmatpush1.bf16.msra.mxu0 %v972
        %1267 = vmatprep.subr.bf16.mxu0 0
        %1268 = vmatpush1.bf16.msra.mxu0 %v973
        %1269 = vmatprep.subr.bf16.mxu0 0
        %1270 = vmatpush1.bf16.msra.mxu0 %v974
        %1271 = vmatprep.subr.bf16.mxu0 0
        %1272 = vmatpush1.bf16.msra.mxu0 %v975
        %1273 = vmatprep.subr.bf16.mxu0 0
        %1274 = vmatpush1.bf16.msra.mxu0 %v976
        %1275 = vmatprep.subr.bf16.mxu0 0
        %1276 = vmatpush1.bf16.msra.mxu0 %v977
        %1277 = vmatprep.subr.bf16.mxu0 0
        %1278 = vmatpush1.bf16.msra.mxu0 %v978
        %1279 = vmatprep.subr.bf16.mxu0 0
        %1280 = vmatpush1.bf16.msra.mxu0 %v979
        %1281 = vmatprep.subr.bf16.mxu0 0
        %1282 = vmatpush1.bf16.msra.mxu0 %v980
        %1283 = vmatprep.subr.bf16.mxu0 0
        %1284 = vmatpush1.bf16.msra.mxu0 %v981
        %1285 = vmatprep.subr.bf16.mxu0 0
        %1286 = vmatpush1.bf16.msra.mxu0 %v982
        %1287 = vmatprep.subr.bf16.mxu0 0
        %1288 = vmatpush1.bf16.msra.mxu0 %v983
        %1289 = vmatprep.subr.bf16.mxu0 0
        %1290 = vmatpush1.bf16.msra.mxu0 %v984
        %1291 = vmatprep.subr.bf16.mxu0 0
        %1292 = vmatpush1.bf16.msra.mxu0 %v985
        %1293 = vmatprep.mubr.bf16.mxu0 %v569
        %1294 = vmatmul.mubr.bf16.gmra.mrb[0].mxu0 %v568
        %v1295 = vpop.f32.mrb[0].mxu0
        %v1296 = vadd.f32 %v1231, %v1295
        %v1297 = vpop.f32.mrb[0].mxu0
        %v1298 = vpop.f32.mrb[0].mxu0
        %v1299 = vadd.f32 %v1234, %v1298
        %v1300 = vpop.f32.mrb[0].mxu0
        %1301 = vmatprep.mubr.bf16.mxu0 %v578
        %1302 = vmatmul.mubr.bf16.gmra.mrb[0].mxu0 %v577
        %v1303 = vpop.f32.mrb[0].mxu0
        %v1304 = vadd.f32 %v1239, %v1303
        %v1305 = vpop.f32.mrb[0].mxu0
        %v1306 = vpop.f32.mrb[0].mxu0
        %v1307 = vadd.f32 %v1242, %v1306
        %v1308 = vpop.f32.mrb[0].mxu0
        %1309 = vmatprep.mubr.bf16.mxu0 %v587
        %1310 = vmatmul.mubr.bf16.gmra.mrb[0].mxu0 %v586
        %v1311 = vpop.f32.mrb[0].mxu0
        %v1312 = vadd.f32 %v1247, %v1311
        %v1313 = vpop.f32.mrb[0].mxu0
        %v1314 = vpop.f32.mrb[0].mxu0
        %v1315 = vadd.f32 %v1250, %v1314
        %v1316 = vpop.f32.mrb[0].mxu0
        %1317 = vmatprep.mubr.bf16.mxu0 %v596
        %1318 = vmatmul.mubr.bf16.gmra.mrb[0].mxu0 %v595
        %v1319 = vpop.f32.mrb[0].mxu0
        %v1320 = vadd.f32 %v1255, %v1319
        %v1321 = vpop.f32.mrb[0].mxu0
        %v1322 = vpop.f32.mrb[0].mxu0
        %v1323 = vadd.f32 %v1258, %v1322
        %v1324 = vpop.f32.mrb[0].mxu0
        %1325 = vdwg.mxu0
        %1326 = vmatprep.subr.bf16.mxu0 0
        %1327 = vmatpush1.bf16.msra.mxu0 %v986
        %1328 = vmatprep.subr.bf16.mxu0 0
        %1329 = vmatpush1.bf16.msra.mxu0 %v987
        %1330 = vmatprep.subr.bf16.mxu0 0
        %1331 = vmatpush1.bf16.msra.mxu0 %v988
        %1332 = vmatprep.subr.bf16.mxu0 0
        %1333 = vmatpush1.bf16.msra.mxu0 %v989
        %1334 = vmatprep.subr.bf16.mxu0 0
        %1335 = vmatpush1.bf16.msra.mxu0 %v990
        %1336 = vmatprep.subr.bf16.mxu0 0
        %1337 = vmatpush1.bf16.msra.mxu0 %v991
        %1338 = vmatprep.subr.bf16.mxu0 0
        %1339 = vmatpush1.bf16.msra.mxu0 %v992
        %1340 = vmatprep.subr.bf16.mxu0 0
        %1341 = vmatpush1.bf16.msra.mxu0 %v993
        %1342 = vmatprep.subr.bf16.mxu0 0
        %1343 = vmatpush1.bf16.msra.mxu0 0
        %1344 = vmatprep.subr.bf16.mxu0 0
        %1345 = vmatpush1.bf16.msra.mxu0 0
        %1346 = vmatprep.subr.bf16.mxu0 0
        %1347 = vmatpush1.bf16.msra.mxu0 0
        %1348 = vmatprep.subr.bf16.mxu0 0
        %1349 = vmatpush1.bf16.msra.mxu0 0
        %1350 = vmatprep.subr.bf16.mxu0 0
        %1351 = vmatpush1.bf16.msra.mxu0 0
        %1352 = vmatprep.subr.bf16.mxu0 0
        %1353 = vmatpush1.bf16.msra.mxu0 0
        %1354 = vmatprep.subr.bf16.mxu0 0
        %1355 = vmatpush1.bf16.msra.mxu0 0
        %1356 = vmatprep.subr.bf16.mxu0 0
        %1357 = vmatpush1.bf16.msra.mxu0 0
        %1358 = vmatprep.mubr.bf16.mxu0 0
        %1359 = vmatmul.mubr.bf16.gmra.mrb[0].mxu0 %v570
        %v1360 = vpop.f32.mrb[0].mxu0
        %v1361 = vadd.f32 %v1296, %v1360
        %v1362 = vpop.f32.mrb[0].mxu0
        %v1363 = vpop.f32.mrb[0].mxu0
        %v1364 = vadd.f32 %v1299, %v1363
        %v1365 = vpop.f32.mrb[0].mxu0
        %1366 = vmatprep.mubr.bf16.mxu0 0
        %1367 = vmatmul.mubr.bf16.gmra.mrb[0].mxu0 %v579
        %v1368 = vpop.f32.mrb[0].mxu0
        %v1369 = vadd.f32 %v1304, %v1368
        %v1370 = vpop.f32.mrb[0].mxu0
        %v1371 = vpop.f32.mrb[0].mxu0
        %v1372 = vadd.f32 %v1307, %v1371
        %v1373 = vpop.f32.mrb[0].mxu0
        %1374 = vmatprep.mubr.bf16.mxu0 0
        %1375 = vmatmul.mubr.bf16.gmra.mrb[0].mxu0 %v588
        %v1376 = vpop.f32.mrb[0].mxu0
        %v1377 = vadd.f32 %v1312, %v1376
        %v1378 = vpop.f32.mrb[0].mxu0
        %v1379 = vpop.f32.mrb[0].mxu0
        %v1380 = vadd.f32 %v1315, %v1379
        %v1381 = vpop.f32.mrb[0].mxu0
        %1382 = vmatprep.mubr.bf16.mxu0 0
        %1383 = vmatmul.mubr.bf16.gmra.mrb[0].mxu0 %v597
        %v1384 = vpop.f32.mrb[0].mxu0
        %v1385 = vadd.f32 %v1320, %v1384
        %v1386 = vpop.f32.mrb[0].mxu0
        %v1387 = vpop.f32.mrb[0].mxu0
        %v1388 = vadd.f32 %v1323, %v1387
        %v1389 = vpop.f32.mrb[0].mxu0
        %1390 = vdwg.mxu0
        %v1391 = vmax.f32 %v1361, 0.0
        %v1392 = vmax.f32 %v1364, 0.0
        %v1393 = vmax.f32 %v1369, 0.0
        %v1394 = vmax.f32 %v1372, 0.0
        %v1395 = vmax.f32 %v1377, 0.0
        %v1396 = vmax.f32 %v1380, 0.0
        %v1397 = vmax.f32 %v1385, 0.0
        %v1398 = vmax.f32 %v1388, 0.0
        %v1399 = vld [vmem:[#allocation2] sm:$0x1]
        %v1400 = vadd.f32 %v1391, %v1392
        %v1401 = vadd.f32 %v1400, %v1393
        %v1402 = vadd.f32 %v1401, %v1394
        %v1403 = vadd.f32 %v1402, %v1395
        %v1404 = vadd.f32 %v1403, %v1396
        %v1405 = vadd.f32 %v1404, %v1397
        %v1406 = vadd.f32 %v1405, %v1398
        %v1407 = vrot.slane %v1406, 4
        %v1408 = vadd.f32 %v1406, %v1407
        %v1409 = vrot.slane %v1408, 2
        %v1410 = vadd.f32 %v1408, %v1409
        %v1411 = vrot.slane %v1410, 1
        %v1412 = vadd.f32 %v1410, %v1411
        %v1413 = vadd.f32 %v1399, %v1412
        %1414 = vst [vmem:[#allocation2] sm:$0x1] %v1413
        // Predicated region
        $region45: #{class_network_forward.3} parent=39 // pred_check
          %p1415 = pneg %p254
        $region46: #{class_network_forward.3} parent=39 // pred_check_branch
          %1417 = sbr.rel (%p1415) target = $region48
        $region47: #{class_network_forward.3} parent=39 // pred_region
          %v1418 = vld [vmem:[#allocation2] sm:$0x1]
          %v1419 = vmul.f32 %v1418, 0.015625
          %v1420 = vld [vmem:[%s3] sm:$0xff]
          %v1421 = vld [vmem:[%s3 + $0x8] sm:$0xff]
          %v1422 = vld [vmem:[%s3 + $0x10] sm:$0xff]
          %v1423 = vld [vmem:[%s3 + $0x18] sm:$0xff]
          %v1424 = vld [vmem:[%s3 + $0x20] sm:$0xff]
          %v1425 = vld [vmem:[%s3 + $0x28] sm:$0xff]
          %v1426 = vld [vmem:[%s3 + $0x30] sm:$0xff]
          %v1427 = vld [vmem:[%s3 + $0x38] sm:$0xff]
          %v1428 = vld [vmem:[%s3 + $0x40] sm:$0xff]
          %v1429 = vld [vmem:[%s3 + $0x48] sm:$0xff]
          %v1430 = vld [vmem:[%s3 + $0x50] sm:$0xff]
          %v1431 = vld [vmem:[%s3 + $0x58] sm:$0xff]
          %v1432 = vld [vmem:[%s3 + $0x60] sm:$0xff]
          %v1433 = vld [vmem:[%s3 + $0x68] sm:$0xff]
          %v1434 = vld [vmem:[%s3 + $0x70] sm:$0xff]
          %v1435 = vld [vmem:[%s3 + $0x78] sm:$0xff]
          %v1436 = vld [vmem:[%s4] sm:$0x1]
          %1437 = vmatprep.subr.mxu0 0.0
          %1438 = vmatpush1.msra.mxu0 %v1420
          %1439 = vmatprep.subr.mxu0 0.0
          %1440 = vmatpush1.msra.mxu0 %v1421
          %1441 = vmatprep.subr.mxu0 0.0
          %1442 = vmatpush1.msra.mxu0 %v1422
          %1443 = vmatprep.subr.mxu0 0.0
          %1444 = vmatpush1.msra.mxu0 %v1423
          %1445 = vmatprep.subr.mxu0 0.0
          %1446 = vmatpush1.msra.mxu0 %v1424
          %1447 = vmatprep.subr.mxu0 0.0
          %1448 = vmatpush1.msra.mxu0 %v1425
          %1449 = vmatprep.subr.mxu0 0.0
          %1450 = vmatpush1.msra.mxu0 %v1426
          %1451 = vmatprep.subr.mxu0 0.0
          %1452 = vmatpush1.msra.mxu0 %v1427
          %1453 = vmatprep.subr.mxu0 0.0
          %1454 = vmatpush1.msra.mxu0 %v1428
          %1455 = vmatprep.subr.mxu0 0.0
          %1456 = vmatpush1.msra.mxu0 %v1429
          %1457 = vmatprep.subr.mxu0 0.0
          %1458 = vmatpush1.msra.mxu0 %v1430
          %1459 = vmatprep.subr.mxu0 0.0
          %1460 = vmatpush1.msra.mxu0 %v1431
          %1461 = vmatprep.subr.mxu0 0.0
          %1462 = vmatpush1.msra.mxu0 %v1432
          %1463 = vmatprep.subr.mxu0 0.0
          %1464 = vmatpush1.msra.mxu0 %v1433
          %1465 = vmatprep.subr.mxu0 0.0
          %1466 = vmatpush1.msra.mxu0 %v1434
          %1467 = vmatprep.subr.mxu0 0.0
          %1468 = vmatpush1.msra.mxu0 %v1435
          %1469 = vmatprep.subr.mxu0 0.0
          %1470 = vmatpush1.msra.mxu0 0.0
          %1471 = vmatprep.subr.mxu0 0.0
          %1472 = vmatpush1.msra.mxu0 0.0
          %1473 = vmatprep.subr.mxu0 0.0
          %1474 = vmatpush1.msra.mxu0 0.0
          %1475 = vmatprep.subr.mxu0 0.0
          %1476 = vmatpush1.msra.mxu0 0.0
          %1477 = vmatprep.subr.mxu0 0.0
          %1478 = vmatpush1.msra.mxu0 0.0
          %1479 = vmatprep.subr.mxu0 0.0
          %1480 = vmatpush1.msra.mxu0 0.0
          %1481 = vmatprep.subr.mxu0 0.0
          %1482 = vmatpush1.msra.mxu0 0.0
          %1483 = vmatprep.subr.mxu0 0.0
          %1484 = vmatpush1.msra.mxu0 0.0
          %1485 = vmatprep.subr.mxu0 0.0
          %1486 = vmatpush1.msra.mxu0 0.0
          %1487 = vmatprep.subr.mxu0 0.0
          %1488 = vmatpush1.msra.mxu0 0.0
          %1489 = vmatprep.subr.mxu0 0.0
          %1490 = vmatpush1.msra.mxu0 0.0
          %1491 = vmatprep.subr.mxu0 0.0
          %1492 = vmatpush1.msra.mxu0 0.0
          %1493 = vmatprep.subr.mxu0 0.0
          %1494 = vmatpush1.msra.mxu0 0.0
          %1495 = vmatprep.subr.mxu0 0.0
          %1496 = vmatpush1.msra.mxu0 0.0
          %1497 = vmatprep.subr.mxu0 0.0
          %1498 = vmatpush1.msra.mxu0 0.0
          %1499 = vmatprep.subr.mxu0 0.0
          %1500 = vmatpush1.msra.mxu0 0.0
          %1501 = vmatprep.mubr.f32.mxu0 0.0
          %1502 = vmatmul.mubr.f32.gmra.mrb[0].mxu0 %v1419
          %v1503 = vpop.f32.mrb[0].mxu0
          %v1504 = vadd.f32 %v1436, %v1503
          %v1505 = vpop.f32.mrb[0].mxu0
          %1506 = vdwg.mxu0
          %vm1507 = vcmask 1040384
          %v1508 = vsel %vm1507, %v1504, -inf
          %1509 = vmax.xlane.f32.xlu0 %v1508
          %v1510 = vpop.xlane.xlu0 %1509
          %v1511 = vsub.f32 %v1504, %v1510
          %v1512 = vmul.f32 %v1511, 1.442695
          %v1513 = vpow.pop %v1512
          %v1514 = vsel %vm1507, %v1513, 0.0
          %1515 = vadd.xlane.f32.xlu0 %v1514
          %v1516 = vpop.xlane.xlu0 %1515
          %v1517 = vrcp.pop %v1516
          %v1518 = vmul.f32 %v1513, %v1517
          %1519 = vst [vmem:[%s241] sm:$0x1] %v1518
        $region48: #{class_network_forward.3} parent=39 // pred_fallthru
          _
        %s1520 = sand.u32 %s151, 1
        %s1521 = scalar_lea.sflag [#allocation4], %s1520
        %s1522 = sand.u32 %s151, 1
        %s1523 = scalar_lea.vmem [#allocation3], %s1522
        // Predicated region
        $region49: #{class_network_forward.3} parent=39 // pred_check
          %p1524 = pneg %p161
        $region50: #{class_network_forward.3} parent=39 // pred_check_branch
          %1526 = sbr.rel (%p1524) target = $region52
        $region51: #{class_network_forward.3} parent=39 // pred_region
          %s1528 = ssub.s32 16, 16
          %1529 = vsyncadd %s1521, %s1528
          %s1530 = smul.addr %s23, 16
          %s1531 = scalar_lea.hbm %s5, %s1530
          %s1533 = sshll.u32 %s1523, 4
          %s1534 = int_to_ptr.vmem [resolvable:$true] %s1533
          %1536 = dma.vmem_to_hbm [thread:$0]  %s1534, 16, %s1531, %s1521
        $region52: #{class_network_forward.3} parent=39 // pred_fallthru
          _
      $region40: #{class_network_forward.3} parent=5 // pred_fallthru
        _
      %p1537 = scmp.le.s32.totalorder 2, %s14
      // Predicated region
      $region53: #{class_network_forward.3} parent=5 // pred_check
        %p1538 = pneg %p1537
      $region54: #{class_network_forward.3} parent=5 // pred_check_branch
        %1540 = sbr.rel (%p1538) target = $region56
      $region55: #{class_network_forward.3} parent=5 // pred_region
        %s1541 = ssub.s32 %s14, 2
        // Predicated region
        $region57: #{class_network_forward.3} parent=55 // pred_check
          %p1542 = pneg %p167
        $region58: #{class_network_forward.3} parent=55 // pred_check_branch
          %1544 = sbr.rel (%p1542) target = $region60
        $region59: #{class_network_forward.3} parent=55 // pred_region
          %s1545 = sand.u32 %s152, 1
          %s1546 = scalar_lea.sflag [#allocation4], %s1545
          %s1547 = sand.u32 %s152, 1
          %s1548 = scalar_lea.vmem [#allocation3], %s1547
          %1549 = dma.done %s1546, 16
        $region60: #{class_network_forward.3} parent=55 // pred_fallthru
          _
      $region56: #{class_network_forward.3} parent=5 // pred_fallthru
        _
    $region6: #{class_network_forward.3} parent=1 // loop_footer
      %s18 = sadd.s32 1, %s14
    $region7: #{class_network_forward.3} parent=1 // loop_footer_branch
      %13 = sbr.rel target = $region3
    $region8: #{class_network_forward.3} parent=1 // loop_exit
      _
    %1550 = vsyncpa [#allocation4], 1
    %s1551 = scalar_lea.sflag [#allocation4], 1
    %1552 = vsyncpa %s1551, 1

</llo_original>
